<compile_context>
chip_gen: v7x
topology: tpu7x:2x2x1
jax: 0.10.0
libtpu: 0.0.40
codegen_flags: <defaults>
</compile_context>

<pallas_src>
import numpy as np
import jax
import jax.numpy as jnp
from jax import lax
from jax.experimental import pallas as pl
from jax.experimental.pallas import tpu as pltpu


# 3x3 conv tap offsets (dh, dw), ordered to match an OIHW -> (O, kh, kw, I)
# -> (O, 9*I) weight flattening (tap-major, channel-minor).
_TAPS = tuple((kh - 1, kw - 1) for kh in range(3) for kw in range(3))


def _ceil_to(x, m):
    return ((x + m - 1) // m) * m


def _shift_lanes(x, d):
    """y[..., p] = x[..., (p + d) % n] for a static int d (XLU lane rotation)."""
    n = x.shape[-1]
    s = (-d) % n
    if s == 0:
        return x
    # pltpu.roll follows np.roll convention: roll(x, s)[p] = x[(p - s) % n].
    return pltpu.roll(x, s, x.ndim - 1)


def _conv1_masks(H, W, B):
    """(9, 1, B*H*W) 0/1 boundary masks for a 3x3/pad-1 conv on an HxW map,
    tiled across the B samples stacked on the lane axis."""
    p = np.arange(H * W)
    hh, ww = p // W, p % W
    m = np.zeros((9, H * W), np.float32)
    for t, (dh, dw) in enumerate(_TAPS):
        m[t] = ((hh + dh >= 0) & (hh + dh <= H - 1) &
                (ww + dw >= 0) & (ww + dw <= W - 1))
    return np.tile(m, (1, B)).reshape(9, 1, B * H * W)


def _conv2_masks(H, W, B):
    """Masks for the 3x3/pad-1 conv on the 2x-pooled (H/2 x W/2) map, expressed
    in FULL-resolution lane coordinates.  Only the (even,even) anchor lanes are
    ever read downstream, so non-anchor values are irrelevant."""
    H2, W2 = H // 2, W // 2
    p = np.arange(H * W)
    ho, wo = (p // W) // 2, (p % W) // 2
    m = np.zeros((9, H * W), np.float32)
    for t, (dh, dw) in enumerate(_TAPS):
        m[t] = ((ho + dh >= 0) & (ho + dh <= H2 - 1) &
                (wo + dw >= 0) & (wo + dw <= W2 - 1))
    return np.tile(m, (1, B)).reshape(9, 1, B * H * W)


def _gap_matrix(H, W, B):
    """(B*H*W, B) matrix: per-sample mean over the pooled-grid anchor lanes
    (implements AdaptiveAvgPool2d(1) + the per-sample segmented reduction)."""
    H2, W2 = H // 2, W // 2
    HW = H * W
    p = np.arange(HW)
    anchor = (((p // W) % 2 == 0) & ((p % W) % 2 == 0)).astype(np.float32)
    g = np.zeros((B * HW, B), np.float32)
    for b in range(B):
        g[b * HW:(b + 1) * HW, b] = anchor / float(H2 * W2)
    return g


def _make_fused_kernel(W, Cin_p, C1_p, compute_dtype):
    cdt = compute_dtype

    def kernel(x_ref, w1_ref, b1_ref, w2_ref, b2_ref, m1_ref, m2_ref,
               g_ref, fcw_ref, fcb_ref, o_ref, p1_ref, p2_ref):
        # ---- segment 0: Conv2d(Cin->C1, 3x3, pad=1) + ReLU + MaxPool2d(2) ----
        x = x_ref[0]                                          # (Cin_p, B*HW) f32
        # im2col: 9 lane-rotated, boundary-masked copies of x written as
        # aligned 8-sublane slabs (Cin_p % 8 == 0 -> unmasked, aligned vst).
        for t, (dh, dw) in enumerate(_TAPS):
            tap = _shift_lanes(x, dh * W + dw)
            if dh or dw:
                tap = tap * m1_ref[t]                         # (1, n) precomputed mask
            p1_ref[t * Cin_p:(t + 1) * Cin_p, :] = tap
        a1 = jnp.dot(w1_ref[...], p1_ref[...].astype(cdt),
                     preferred_element_type=jnp.float32)      # (C1_p, n) MXU
        a1 = jnp.maximum(a1 + b1_ref[...], 0.0)               # bias + ReLU (f32 VPU)
        # 2x2 / stride-2 max pool: window max of 4 lane-shifted copies; values
        # are the pooled outputs at the (even row, even col) anchor lanes.
        m = jnp.maximum(jnp.maximum(a1, _shift_lanes(a1, 1)),
                        jnp.maximum(_shift_lanes(a1, W),
                                    _shift_lanes(a1, W + 1)))
        # ---- segment 1: Conv2d(C1->C2, 3x3, pad=1) + ReLU ---------------------
        # im2col directly on the anchor-lane layout: pooled-map neighbours sit
        # 2*dh*W + 2*dw lanes away; masks zero out-of-range / cross-sample taps.
        for t, (dh, dw) in enumerate(_TAPS):
            tap = _shift_lanes(m, 2 * (dh * W + dw))
            if dh or dw:
                tap = tap * m2_ref[t]
            p2_ref[t * C1_p:(t + 1) * C1_p, :] = tap
        a2 = jnp.dot(w2_ref[...], p2_ref[...].astype(cdt),
                     preferred_element_type=jnp.float32)      # (C2, n)
        a2 = jnp.maximum(a2 + b2_ref[...], 0.0)
        # ---- segment 2: AdaptiveAvgPool2d(1) + Flatten + Linear ---------------
        # Per-sample mean over anchor lanes via one (C2, n) @ (n, B) matmul.
        gap = jnp.dot(a2, g_ref[...],
                      preferred_element_type=jnp.float32)     # (C2, B)
        # Linear head kept in (K, B) orientation (no in-kernel transpose); the
        # wrapper untransposes once in XLA.
        o_ref[0] = jnp.dot(fcw_ref[...], gap,
                           preferred_element_type=jnp.float32) + fcb_ref[...]

    return kernel


def prepare_params(params, image_hw, batch_tile=8, compute_dtype=jnp.bfloat16):
    """One-time weight re-layout + static mask/reduction constants.

    batch_tile: samples processed per grid step (stacked along the lane axis).
      Pick ~8-32 for real workloads; on v7x keep ceil(N / batch_tile) >= 2 so
      both TensorCores get grid steps.
    compute_dtype: MXU operand dtype (bf16 recommended; f32 for strict checks
      and for generations/paths where bf16 MXU inputs are undesirable).
    """
    H, W = image_hw
    assert H % 2 == 0 and W % 2 == 0, "fused maxpool path assumes even H, W"
    cdt = compute_dtype
    w1 = params["conv1_w"]                      # (C1, Cin, 3, 3) PyTorch OIHW
    w2 = params["conv2_w"]                      # (C2, C1, 3, 3)
    C1, Cin = int(w1.shape[0]), int(w1.shape[1])
    C2 = int(w2.shape[0])
    K = int(params["fc_w"].shape[0])
    Cin_p = _ceil_to(Cin, 8)                    # pad so im2col slabs are aligned
    C1_p = _ceil_to(C1, 8)
    w1p = jnp.pad(w1, ((0, C1_p - C1), (0, Cin_p - Cin), (0, 0), (0, 0)))
    w2p = jnp.pad(w2, ((0, 0), (0, C1_p - C1), (0, 0), (0, 0)))
    # im2col-flattened weights: column order (kh*3+kw)*C + ci matches the
    # patch rows written by the kernel (tap-major, channel-minor).
    w1f = jnp.transpose(w1p, (0, 2, 3, 1)).reshape(C1_p, 9 * Cin_p).astype(cdt)
    w2f = jnp.transpose(w2p, (0, 2, 3, 1)).reshape(C2, 9 * C1_p).astype(cdt)
    b1 = jnp.pad(params["conv1_b"], (0, C1_p - C1)).reshape(C1_p, 1)
    B = int(batch_tile)
    return {
        "w1f": w1f,
        "b1": b1.astype(jnp.float32),
        "w2f": w2f,
        "b2": params["conv2_b"].reshape(C2, 1).astype(jnp.float32),
        "mask1": jnp.asarray(_conv1_masks(H, W, B)),           # (9, 1, B*HW) f32
        "mask2": jnp.asarray(_conv2_masks(H, W, B)),           # (9, 1, B*HW) f32
        "gap": jnp.asarray(_gap_matrix(H, W, B)),              # (B*HW, B) f32
        "fcw": params["fc_w"].astype(jnp.float32),             # (K, C2)
        "fcb": params["fc_b"].reshape(K, 1).astype(jnp.float32),
    }


def checkpointable_forward(x_nchw, prep):
    """Forward pass == composition of the segments, fused into one pallas_call."""
    N, Cin, H, W = x_nchw.shape
    assert H % 2 == 0 and W % 2 == 0, "fused maxpool path assumes even H, W"
    HW = H * W
    # All static config is derived from array shapes (jit-safe).
    B = prep["gap"].shape[1]
    n = prep["mask1"].shape[-1]
    assert n == B * HW, "prepare_params image_hw/batch_tile mismatch with input"
    Cin_p = prep["w1f"].shape[1] // 9
    C1_p = prep["w1f"].shape[0]
    C2 = prep["w2f"].shape[0]
    K = prep["fcw"].shape[0]
    assert Cin <= Cin_p
    cdt = prep["w1f"].dtype

    steps = -(-N // B)                     # cdiv
    Npad = steps * B
    x = x_nchw.reshape(N, Cin, HW).astype(jnp.float32)
    if Npad != N or Cin_p != Cin:
        x = jnp.pad(x, ((0, Npad - N), (0, Cin_p - Cin), (0, 0)))
    # (steps, B, Cin_p, HW) -> (steps, Cin_p, B*HW): B samples stacked on lanes.
    xb = (x.reshape(steps, B, Cin_p, HW)
           .transpose(0, 2, 1, 3)
           .reshape(steps, Cin_p, n))

    kernel = _make_fused_kernel(W, Cin_p, C1_p, cdt)
    out = pl.pallas_call(
        kernel,
        out_shape=jax.ShapeDtypeStruct((steps, K, B), jnp.float32),
        grid=(steps,),
        in_specs=[
            pl.BlockSpec((1, Cin_p, n), lambda g: (g, 0, 0)),      # x tile (B samples)
            pl.BlockSpec((C1_p, 9 * Cin_p), lambda g: (0, 0)),     # conv1 weight (im2col)
            pl.BlockSpec((C1_p, 1), lambda g: (0, 0)),             # conv1 bias
            pl.BlockSpec((C2, 9 * C1_p), lambda g: (0, 0)),        # conv2 weight (im2col)
            pl.BlockSpec((C2, 1), lambda g: (0, 0)),               # conv2 bias
            pl.BlockSpec((9, 1, n), lambda g: (0, 0, 0)),          # conv1 boundary masks
            pl.BlockSpec((9, 1, n), lambda g: (0, 0, 0)),          # conv2 boundary masks
            pl.BlockSpec((n, B), lambda g: (0, 0)),                # avg-pool reduction matrix
            pl.BlockSpec((K, C2), lambda g: (0, 0)),               # fc weight
            pl.BlockSpec((K, 1), lambda g: (0, 0)),                # fc bias
        ],
        out_specs=pl.BlockSpec((1, K, B), lambda g: (g, 0, 0)),
        scratch_shapes=[
            pltpu.VMEM((9 * Cin_p, n), jnp.float32),               # conv1 im2col patches
            pltpu.VMEM((9 * C1_p, n), jnp.float32),                # conv2 im2col patches
        ],
        # Tiny VMEM footprint here (<1 MB); set vmem_limit_bytes explicitly if
        # batch_tile/image size is pushed far larger (v7x default scope = 32 MiB).
        compiler_params=pltpu.CompilerParams(
            dimension_semantics=("parallel",),                     # v7x: steps across 2 TCs
        ),
    )(xb, prep["w1f"], prep["b1"], prep["w2f"], prep["b2"],
      prep["mask1"], prep["mask2"], prep["gap"], prep["fcw"], prep["fcb"])
    # (steps, K, B) -> (Npad, K) -> (N, K)
    return out.transpose(0, 2, 1).reshape(Npad, K)[:N]


# ----------------------------------------------------------------------------
# Deterministic parameter init mirroring Checkpointable.__init_weights.
# ----------------------------------------------------------------------------
def init_params(key, cin=4, c1=8, c2=8, out_classes=10):
    k1, k2, k3 = jax.random.split(key, 3)
    std1 = (2.0 / (c1 * 3 * 3)) ** 0.5   # kaiming_normal_, mode='fan_out', relu
    std2 = (2.0 / (c2 * 3 * 3)) ** 0.5
    return {
        "conv1_w": std1 * jax.random.normal(k1, (c1, cin, 3, 3), jnp.float32),
        "conv1_b": jnp.zeros((c1,), jnp.float32),
        "conv2_w": std2 * jax.random.normal(k2, (c2, c1, 3, 3), jnp.float32),
        "conv2_b": jnp.zeros((c2,), jnp.float32),
        "fc_w": 0.01 * jax.random.normal(k3, (out_classes, c2), jnp.float32),  # normal(0, 0.01)
        "fc_b": jnp.zeros((out_classes,), jnp.float32),
    }


# Pure-JAX reference (same math via XLA ops) for the correctness check.
def reference_forward(x_nchw, params):
    dn = ("NCHW", "OIHW", "NCHW")
    x = lax.conv_general_dilated(x_nchw, params["conv1_w"], (1, 1), "SAME",
                                 dimension_numbers=dn)
    x = jax.nn.relu(x + params["conv1_b"][None, :, None, None])
    x = lax.reduce_window(x, -jnp.inf, lax.max, (1, 1, 2, 2), (1, 1, 2, 2), "VALID")
    x = lax.conv_general_dilated(x, params["conv2_w"], (1, 1), "SAME",
                                 dimension_numbers=dn)
    x = jax.nn.relu(x + params["conv2_b"][None, :, None, None])
    x = jnp.mean(x, axis=(2, 3))
    return x @ params["fc_w"].T + params["fc_b"][None, :]


if __name__ == "__main__":
    key = jax.random.PRNGKey(0)
    kx, kp = jax.random.split(key)
    x = jax.random.normal(kx, (2, 4, 16, 16), jnp.float32)   # NCHW (PyTorch layout)
    params = init_params(kp, cin=4, c1=8, c2=8, out_classes=10)
    ref = jax.block_until_ready(reference_forward(x, params))

    fwd = jax.jit(checkpointable_forward)

    # Strict check: f32 MXU operands (also the safe path for v5e).
    prep_f32 = prepare_params(params, image_hw=(16, 16), batch_tile=2,
                              compute_dtype=jnp.float32)
    out_f32 = jax.block_until_ready(fwd(x, prep_f32))
    assert out_f32.shape == (2, 10), out_f32.shape
    assert jnp.allclose(out_f32, ref, atol=2e-3, rtol=1e-2), (out_f32, ref)

    # Fast path on v6e/v7x: bf16 MXU operands, f32 accumulate / VPU math.
    # batch_tile=4 also exercises the N -> ceil(N/B)*B padding path.
    prep_bf16 = prepare_params(params, image_hw=(16, 16), batch_tile=4,
                               compute_dtype=jnp.bfloat16)
    out_bf16 = jax.block_until_ready(fwd(x, prep_bf16))
    assert out_bf16.shape == (2, 10), out_bf16.shape
    assert jnp.allclose(out_bf16, ref, atol=1e-2, rtol=1e-1), (out_bf16, ref)

    print("KERNEL_OK")
</pallas_src>

<mosaic_0001>
module attributes {stable_mosaic.version = 11 : i64} {
  func.func @kernel(%arg0: i32, %arg1: memref<1x8x512xf32, #tpu.memory_space<vmem>>, %arg2: memref<8x72xf32, #tpu.memory_space<vmem>>, %arg3: memref<8x1xf32, #tpu.memory_space<vmem>>, %arg4: memref<8x72xf32, #tpu.memory_space<vmem>>, %arg5: memref<8x1xf32, #tpu.memory_space<vmem>>, %arg6: memref<9x1x512xf32, #tpu.memory_space<vmem>>, %arg7: memref<9x1x512xf32, #tpu.memory_space<vmem>>, %arg8: memref<512x2xf32, #tpu.memory_space<vmem>>, %arg9: memref<10x8xf32, #tpu.memory_space<vmem>>, %arg10: memref<10x1xf32, #tpu.memory_space<vmem>>, %arg11: memref<1x10x2xf32, #tpu.memory_space<vmem>>, %arg12: memref<72x512xf32, #tpu.memory_space<vmem>>, %arg13: memref<72x512xf32, #tpu.memory_space<vmem>>) attributes {dimension_semantics = [#tpu.dimension_semantics<parallel>], iteration_bounds = array<i64: 1>, scalar_prefetch = 0 : i64, scratch_operands = 2 : i64, tpu.core_type = #tpu.core_type<tc>, window_params = [{transform_indices = @transform_0, window_bounds = array<i64: 1, 8, 512>}, {pipeline_mode = #tpu.pipeline_mode<synchronous>, transform_indices = @transform_1, window_bounds = array<i64: 8, 72>}, {pipeline_mode = #tpu.pipeline_mode<synchronous>, transform_indices = @transform_2, window_bounds = array<i64: 8, 1>}, {pipeline_mode = #tpu.pipeline_mode<synchronous>, transform_indices = @transform_3, window_bounds = array<i64: 8, 72>}, {pipeline_mode = #tpu.pipeline_mode<synchronous>, transform_indices = @transform_4, window_bounds = array<i64: 8, 1>}, {pipeline_mode = #tpu.pipeline_mode<synchronous>, transform_indices = @transform_5, window_bounds = array<i64: 9, 1, 512>}, {pipeline_mode = #tpu.pipeline_mode<synchronous>, transform_indices = @transform_6, window_bounds = array<i64: 9, 1, 512>}, {pipeline_mode = #tpu.pipeline_mode<synchronous>, transform_indices = @transform_7, window_bounds = array<i64: 512, 2>}, {pipeline_mode = #tpu.pipeline_mode<synchronous>, transform_indices = @transform_8, window_bounds = array<i64: 10, 8>}, {pipeline_mode = #tpu.pipeline_mode<synchronous>, transform_indices = @transform_9, window_bounds = array<i64: 10, 1>}, {transform_indices = @transform_10, window_bounds = array<i64: 1, 10, 2>}]} {
    %c0 = arith.constant 0 : index
    %c0_0 = arith.constant 0 : index
    %c0_1 = arith.constant 0 : index
    %0 = vector.load %arg1[%c0, %c0_0, %c0_1] : memref<1x8x512xf32, #tpu.memory_space<vmem>>, vector<1x8x512xf32>
    %1 = vector.shape_cast %0 : vector<1x8x512xf32> to vector<8x512xf32>
    %c17_i32 = arith.constant 17 : i32
    %2 = tpu.dynamic_rotate %1 by %c17_i32 dim 1 : vector<8x512xf32>, i32 -> vector<8x512xf32>
    %c0_2 = arith.constant 0 : index
    %c0_3 = arith.constant 0 : index
    %c0_4 = arith.constant 0 : index
    %3 = vector.load %arg6[%c0_2, %c0_3, %c0_4] : memref<9x1x512xf32, #tpu.memory_space<vmem>>, vector<1x1x512xf32>
    %4 = vector.shape_cast %3 : vector<1x1x512xf32> to vector<1x512xf32>
    %5 = vector.broadcast %4 : vector<1x512xf32> to vector<8x512xf32>
    %6 = arith.mulf %2, %5 : vector<8x512xf32>
    %c0_5 = arith.constant 0 : index
    %c0_6 = arith.constant 0 : index
    %7 = vector.load %arg12[%c0_5, %c0_6] : memref<72x512xf32, #tpu.memory_space<vmem>>, vector<8x512xf32>
    tpu.vector_store %arg12[%c0_5, %c0_6], %6 {strides = array<i32>} : memref<72x512xf32, #tpu.memory_space<vmem>>, vector<8x512xf32>,
    %c16_i32 = arith.constant 16 : i32
    %8 = tpu.dynamic_rotate %1 by %c16_i32 dim 1 : vector<8x512xf32>, i32 -> vector<8x512xf32>
    %c1 = arith.constant 1 : index
    %c0_7 = arith.constant 0 : index
    %c0_8 = arith.constant 0 : index
    %9 = vector.load %arg6[%c1, %c0_7, %c0_8] : memref<9x1x512xf32, #tpu.memory_space<vmem>>, vector<1x1x512xf32>
    %10 = vector.shape_cast %9 : vector<1x1x512xf32> to vector<1x512xf32>
    %11 = vector.broadcast %10 : vector<1x512xf32> to vector<8x512xf32>
    %12 = arith.mulf %8, %11 : vector<8x512xf32>
    %c8 = arith.constant 8 : index
    %c0_9 = arith.constant 0 : index
    %13 = vector.load %arg12[%c8, %c0_9] : memref<72x512xf32, #tpu.memory_space<vmem>>, vector<8x512xf32>
    tpu.vector_store %arg12[%c8, %c0_9], %12 {strides = array<i32>} : memref<72x512xf32, #tpu.memory_space<vmem>>, vector<8x512xf32>,
    %c15_i32 = arith.constant 15 : i32
    %14 = tpu.dynamic_rotate %1 by %c15_i32 dim 1 : vector<8x512xf32>, i32 -> vector<8x512xf32>
    %c2 = arith.constant 2 : index
    %c0_10 = arith.constant 0 : index
    %c0_11 = arith.constant 0 : index
    %15 = vector.load %arg6[%c2, %c0_10, %c0_11] : memref<9x1x512xf32, #tpu.memory_space<vmem>>, vector<1x1x512xf32>
    %16 = vector.shape_cast %15 : vector<1x1x512xf32> to vector<1x512xf32>
    %17 = vector.broadcast %16 : vector<1x512xf32> to vector<8x512xf32>
    %18 = arith.mulf %14, %17 : vector<8x512xf32>
    %c16 = arith.constant 16 : index
    %c0_12 = arith.constant 0 : index
    %19 = vector.load %arg12[%c16, %c0_12] : memref<72x512xf32, #tpu.memory_space<vmem>>, vector<8x512xf32>
    tpu.vector_store %arg12[%c16, %c0_12], %18 {strides = array<i32>} : memref<72x512xf32, #tpu.memory_space<vmem>>, vector<8x512xf32>,
    %c1_i32 = arith.constant 1 : i32
    %20 = tpu.dynamic_rotate %1 by %c1_i32 dim 1 : vector<8x512xf32>, i32 -> vector<8x512xf32>
    %c3 = arith.constant 3 : index
    %c0_13 = arith.constant 0 : index
    %c0_14 = arith.constant 0 : index
    %21 = vector.load %arg6[%c3, %c0_13, %c0_14] : memref<9x1x512xf32, #tpu.memory_space<vmem>>, vector<1x1x512xf32>
    %22 = vector.shape_cast %21 : vector<1x1x512xf32> to vector<1x512xf32>
    %23 = vector.broadcast %22 : vector<1x512xf32> to vector<8x512xf32>
    %24 = arith.mulf %20, %23 : vector<8x512xf32>
    %c24 = arith.constant 24 : index
    %c0_15 = arith.constant 0 : index
    %25 = vector.load %arg12[%c24, %c0_15] : memref<72x512xf32, #tpu.memory_space<vmem>>, vector<8x512xf32>
    tpu.vector_store %arg12[%c24, %c0_15], %24 {strides = array<i32>} : memref<72x512xf32, #tpu.memory_space<vmem>>, vector<8x512xf32>,
    %c32 = arith.constant 32 : index
    %c0_16 = arith.constant 0 : index
    %26 = vector.load %arg12[%c32, %c0_16] : memref<72x512xf32, #tpu.memory_space<vmem>>, vector<8x512xf32>
    tpu.vector_store %arg12[%c32, %c0_16], %1 {strides = array<i32>} : memref<72x512xf32, #tpu.memory_space<vmem>>, vector<8x512xf32>,
    %c511_i32 = arith.constant 511 : i32
    %27 = tpu.dynamic_rotate %1 by %c511_i32 dim 1 : vector<8x512xf32>, i32 -> vector<8x512xf32>
    %c5 = arith.constant 5 : index
    %c0_17 = arith.constant 0 : index
    %c0_18 = arith.constant 0 : index
    %28 = vector.load %arg6[%c5, %c0_17, %c0_18] : memref<9x1x512xf32, #tpu.memory_space<vmem>>, vector<1x1x512xf32>
    %29 = vector.shape_cast %28 : vector<1x1x512xf32> to vector<1x512xf32>
    %30 = vector.broadcast %29 : vector<1x512xf32> to vector<8x512xf32>
    %31 = arith.mulf %27, %30 : vector<8x512xf32>
    %c40 = arith.constant 40 : index
    %c0_19 = arith.constant 0 : index
    %32 = vector.load %arg12[%c40, %c0_19] : memref<72x512xf32, #tpu.memory_space<vmem>>, vector<8x512xf32>
    tpu.vector_store %arg12[%c40, %c0_19], %31 {strides = array<i32>} : memref<72x512xf32, #tpu.memory_space<vmem>>, vector<8x512xf32>,
    %c497_i32 = arith.constant 497 : i32
    %33 = tpu.dynamic_rotate %1 by %c497_i32 dim 1 : vector<8x512xf32>, i32 -> vector<8x512xf32>
    %c6 = arith.constant 6 : index
    %c0_20 = arith.constant 0 : index
    %c0_21 = arith.constant 0 : index
    %34 = vector.load %arg6[%c6, %c0_20, %c0_21] : memref<9x1x512xf32, #tpu.memory_space<vmem>>, vector<1x1x512xf32>
    %35 = vector.shape_cast %34 : vector<1x1x512xf32> to vector<1x512xf32>
    %36 = vector.broadcast %35 : vector<1x512xf32> to vector<8x512xf32>
    %37 = arith.mulf %33, %36 : vector<8x512xf32>
    %c48 = arith.constant 48 : index
    %c0_22 = arith.constant 0 : index
    %38 = vector.load %arg12[%c48, %c0_22] : memref<72x512xf32, #tpu.memory_space<vmem>>, vector<8x512xf32>
    tpu.vector_store %arg12[%c48, %c0_22], %37 {strides = array<i32>} : memref<72x512xf32, #tpu.memory_space<vmem>>, vector<8x512xf32>,
    %c496_i32 = arith.constant 496 : i32
    %39 = tpu.dynamic_rotate %1 by %c496_i32 dim 1 : vector<8x512xf32>, i32 -> vector<8x512xf32>
    %c7 = arith.constant 7 : index
    %c0_23 = arith.constant 0 : index
    %c0_24 = arith.constant 0 : index
    %40 = vector.load %arg6[%c7, %c0_23, %c0_24] : memref<9x1x512xf32, #tpu.memory_space<vmem>>, vector<1x1x512xf32>
    %41 = vector.shape_cast %40 : vector<1x1x512xf32> to vector<1x512xf32>
    %42 = vector.broadcast %41 : vector<1x512xf32> to vector<8x512xf32>
    %43 = arith.mulf %39, %42 : vector<8x512xf32>
    %c56 = arith.constant 56 : index
    %c0_25 = arith.constant 0 : index
    %44 = vector.load %arg12[%c56, %c0_25] : memref<72x512xf32, #tpu.memory_space<vmem>>, vector<8x512xf32>
    tpu.vector_store %arg12[%c56, %c0_25], %43 {strides = array<i32>} : memref<72x512xf32, #tpu.memory_space<vmem>>, vector<8x512xf32>,
    %c495_i32 = arith.constant 495 : i32
    %45 = tpu.dynamic_rotate %1 by %c495_i32 dim 1 : vector<8x512xf32>, i32 -> vector<8x512xf32>
    %c8_26 = arith.constant 8 : index
    %c0_27 = arith.constant 0 : index
    %c0_28 = arith.constant 0 : index
    %46 = vector.load %arg6[%c8_26, %c0_27, %c0_28] : memref<9x1x512xf32, #tpu.memory_space<vmem>>, vector<1x1x512xf32>
    %47 = vector.shape_cast %46 : vector<1x1x512xf32> to vector<1x512xf32>
    %48 = vector.broadcast %47 : vector<1x512xf32> to vector<8x512xf32>
    %49 = arith.mulf %45, %48 : vector<8x512xf32>
    %c64 = arith.constant 64 : index
    %c0_29 = arith.constant 0 : index
    %50 = vector.load %arg12[%c64, %c0_29] : memref<72x512xf32, #tpu.memory_space<vmem>>, vector<8x512xf32>
    tpu.vector_store %arg12[%c64, %c0_29], %49 {strides = array<i32>} : memref<72x512xf32, #tpu.memory_space<vmem>>, vector<8x512xf32>,
    %c0_30 = arith.constant 0 : index
    %c0_31 = arith.constant 0 : index
    %51 = vector.load %arg2[%c0_30, %c0_31] : memref<8x72xf32, #tpu.memory_space<vmem>>, vector<8x72xf32>
    %c0_32 = arith.constant 0 : index
    %c0_33 = arith.constant 0 : index
    %52 = vector.load %arg12[%c0_32, %c0_33] : memref<72x512xf32, #tpu.memory_space<vmem>>, vector<72x512xf32>
    %cst = arith.constant dense<0.000000e+00> : vector<8x512xf32>
    %53 = tpu.matmul %51, %52, %cst {dimension_numbers = #tpu.dot_dimension_numbers<[1], [0], [0], [1], [0, 0, 1, 1], [], []>} : vector<8x72xf32>, vector<72x512xf32>, vector<8x512xf32> -> vector<8x512xf32>
    %c0_34 = arith.constant 0 : index
    %c0_35 = arith.constant 0 : index
    %54 = vector.load %arg3[%c0_34, %c0_35] : memref<8x1xf32, #tpu.memory_space<vmem>>, vector<8x1xf32>
    %55 = vector.broadcast %54 : vector<8x1xf32> to vector<8x512xf32>
    %56 = arith.addf %53, %55 : vector<8x512xf32>
    %cst_36 = arith.constant 0.000000e+00 : f32
    %57 = vector.broadcast %cst_36 : f32 to vector<8x512xf32>
    %58 = arith.maximumf %56, %57 : vector<8x512xf32>
    %c511_i32_37 = arith.constant 511 : i32
    %59 = tpu.dynamic_rotate %58 by %c511_i32_37 dim 1 : vector<8x512xf32>, i32 -> vector<8x512xf32>
    %60 = arith.maximumf %58, %59 : vector<8x512xf32>
    %c496_i32_38 = arith.constant 496 : i32
    %61 = tpu.dynamic_rotate %58 by %c496_i32_38 dim 1 : vector<8x512xf32>, i32 -> vector<8x512xf32>
    %c495_i32_39 = arith.constant 495 : i32
    %62 = tpu.dynamic_rotate %58 by %c495_i32_39 dim 1 : vector<8x512xf32>, i32 -> vector<8x512xf32>
    %63 = arith.maximumf %61, %62 : vector<8x512xf32>
    %64 = arith.maximumf %60, %63 : vector<8x512xf32>
    %c34_i32 = arith.constant 34 : i32
    %65 = tpu.dynamic_rotate %64 by %c34_i32 dim 1 : vector<8x512xf32>, i32 -> vector<8x512xf32>
    %c0_40 = arith.constant 0 : index
    %c0_41 = arith.constant 0 : index
    %c0_42 = arith.constant 0 : index
    %66 = vector.load %arg7[%c0_40, %c0_41, %c0_42] : memref<9x1x512xf32, #tpu.memory_space<vmem>>, vector<1x1x512xf32>
    %67 = vector.shape_cast %66 : vector<1x1x512xf32> to vector<1x512xf32>
    %68 = vector.broadcast %67 : vector<1x512xf32> to vector<8x512xf32>
    %69 = arith.mulf %65, %68 : vector<8x512xf32>
    %c0_43 = arith.constant 0 : index
    %c0_44 = arith.constant 0 : index
    %70 = vector.load %arg13[%c0_43, %c0_44] : memref<72x512xf32, #tpu.memory_space<vmem>>, vector<8x512xf32>
    tpu.vector_store %arg13[%c0_43, %c0_44], %69 {strides = array<i32>} : memref<72x512xf32, #tpu.memory_space<vmem>>, vector<8x512xf32>,
    %c32_i32 = arith.constant 32 : i32
    %71 = tpu.dynamic_rotate %64 by %c32_i32 dim 1 : vector<8x512xf32>, i32 -> vector<8x512xf32>
    %c1_45 = arith.constant 1 : index
    %c0_46 = arith.constant 0 : index
    %c0_47 = arith.constant 0 : index
    %72 = vector.load %arg7[%c1_45, %c0_46, %c0_47] : memref<9x1x512xf32, #tpu.memory_space<vmem>>, vector<1x1x512xf32>
    %73 = vector.shape_cast %72 : vector<1x1x512xf32> to vector<1x512xf32>
    %74 = vector.broadcast %73 : vector<1x512xf32> to vector<8x512xf32>
    %75 = arith.mulf %71, %74 : vector<8x512xf32>
    %c8_48 = arith.constant 8 : index
    %c0_49 = arith.constant 0 : index
    %76 = vector.load %arg13[%c8_48, %c0_49] : memref<72x512xf32, #tpu.memory_space<vmem>>, vector<8x512xf32>
    tpu.vector_store %arg13[%c8_48, %c0_49], %75 {strides = array<i32>} : memref<72x512xf32, #tpu.memory_space<vmem>>, vector<8x512xf32>,
    %c30_i32 = arith.constant 30 : i32
    %77 = tpu.dynamic_rotate %64 by %c30_i32 dim 1 : vector<8x512xf32>, i32 -> vector<8x512xf32>
    %c2_50 = arith.constant 2 : index
    %c0_51 = arith.constant 0 : index
    %c0_52 = arith.constant 0 : index
    %78 = vector.load %arg7[%c2_50, %c0_51, %c0_52] : memref<9x1x512xf32, #tpu.memory_space<vmem>>, vector<1x1x512xf32>
    %79 = vector.shape_cast %78 : vector<1x1x512xf32> to vector<1x512xf32>
    %80 = vector.broadcast %79 : vector<1x512xf32> to vector<8x512xf32>
    %81 = arith.mulf %77, %80 : vector<8x512xf32>
    %c16_53 = arith.constant 16 : index
    %c0_54 = arith.constant 0 : index
    %82 = vector.load %arg13[%c16_53, %c0_54] : memref<72x512xf32, #tpu.memory_space<vmem>>, vector<8x512xf32>
    tpu.vector_store %arg13[%c16_53, %c0_54], %81 {strides = array<i32>} : memref<72x512xf32, #tpu.memory_space<vmem>>, vector<8x512xf32>,
    %c2_i32 = arith.constant 2 : i32
    %83 = tpu.dynamic_rotate %64 by %c2_i32 dim 1 : vector<8x512xf32>, i32 -> vector<8x512xf32>
    %c3_55 = arith.constant 3 : index
    %c0_56 = arith.constant 0 : index
    %c0_57 = arith.constant 0 : index
    %84 = vector.load %arg7[%c3_55, %c0_56, %c0_57] : memref<9x1x512xf32, #tpu.memory_space<vmem>>, vector<1x1x512xf32>
    %85 = vector.shape_cast %84 : vector<1x1x512xf32> to vector<1x512xf32>
    %86 = vector.broadcast %85 : vector<1x512xf32> to vector<8x512xf32>
    %87 = arith.mulf %83, %86 : vector<8x512xf32>
    %c24_58 = arith.constant 24 : index
    %c0_59 = arith.constant 0 : index
    %88 = vector.load %arg13[%c24_58, %c0_59] : memref<72x512xf32, #tpu.memory_space<vmem>>, vector<8x512xf32>
    tpu.vector_store %arg13[%c24_58, %c0_59], %87 {strides = array<i32>} : memref<72x512xf32, #tpu.memory_space<vmem>>, vector<8x512xf32>,
    %c32_60 = arith.constant 32 : index
    %c0_61 = arith.constant 0 : index
    %89 = vector.load %arg13[%c32_60, %c0_61] : memref<72x512xf32, #tpu.memory_space<vmem>>, vector<8x512xf32>
    tpu.vector_store %arg13[%c32_60, %c0_61], %64 {strides = array<i32>} : memref<72x512xf32, #tpu.memory_space<vmem>>, vector<8x512xf32>,
    %c510_i32 = arith.constant 510 : i32
    %90 = tpu.dynamic_rotate %64 by %c510_i32 dim 1 : vector<8x512xf32>, i32 -> vector<8x512xf32>
    %c5_62 = arith.constant 5 : index
    %c0_63 = arith.constant 0 : index
    %c0_64 = arith.constant 0 : index
    %91 = vector.load %arg7[%c5_62, %c0_63, %c0_64] : memref<9x1x512xf32, #tpu.memory_space<vmem>>, vector<1x1x512xf32>
    %92 = vector.shape_cast %91 : vector<1x1x512xf32> to vector<1x512xf32>
    %93 = vector.broadcast %92 : vector<1x512xf32> to vector<8x512xf32>
    %94 = arith.mulf %90, %93 : vector<8x512xf32>
    %c40_65 = arith.constant 40 : index
    %c0_66 = arith.constant 0 : index
    %95 = vector.load %arg13[%c40_65, %c0_66] : memref<72x512xf32, #tpu.memory_space<vmem>>, vector<8x512xf32>
    tpu.vector_store %arg13[%c40_65, %c0_66], %94 {strides = array<i32>} : memref<72x512xf32, #tpu.memory_space<vmem>>, vector<8x512xf32>,
    %c482_i32 = arith.constant 482 : i32
    %96 = tpu.dynamic_rotate %64 by %c482_i32 dim 1 : vector<8x512xf32>, i32 -> vector<8x512xf32>
    %c6_67 = arith.constant 6 : index
    %c0_68 = arith.constant 0 : index
    %c0_69 = arith.constant 0 : index
    %97 = vector.load %arg7[%c6_67, %c0_68, %c0_69] : memref<9x1x512xf32, #tpu.memory_space<vmem>>, vector<1x1x512xf32>
    %98 = vector.shape_cast %97 : vector<1x1x512xf32> to vector<1x512xf32>
    %99 = vector.broadcast %98 : vector<1x512xf32> to vector<8x512xf32>
    %100 = arith.mulf %96, %99 : vector<8x512xf32>
    %c48_70 = arith.constant 48 : index
    %c0_71 = arith.constant 0 : index
    %101 = vector.load %arg13[%c48_70, %c0_71] : memref<72x512xf32, #tpu.memory_space<vmem>>, vector<8x512xf32>
    tpu.vector_store %arg13[%c48_70, %c0_71], %100 {strides = array<i32>} : memref<72x512xf32, #tpu.memory_space<vmem>>, vector<8x512xf32>,
    %c480_i32 = arith.constant 480 : i32
    %102 = tpu.dynamic_rotate %64 by %c480_i32 dim 1 : vector<8x512xf32>, i32 -> vector<8x512xf32>
    %c7_72 = arith.constant 7 : index
    %c0_73 = arith.constant 0 : index
    %c0_74 = arith.constant 0 : index
    %103 = vector.load %arg7[%c7_72, %c0_73, %c0_74] : memref<9x1x512xf32, #tpu.memory_space<vmem>>, vector<1x1x512xf32>
    %104 = vector.shape_cast %103 : vector<1x1x512xf32> to vector<1x512xf32>
    %105 = vector.broadcast %104 : vector<1x512xf32> to vector<8x512xf32>
    %106 = arith.mulf %102, %105 : vector<8x512xf32>
    %c56_75 = arith.constant 56 : index
    %c0_76 = arith.constant 0 : index
    %107 = vector.load %arg13[%c56_75, %c0_76] : memref<72x512xf32, #tpu.memory_space<vmem>>, vector<8x512xf32>
    tpu.vector_store %arg13[%c56_75, %c0_76], %106 {strides = array<i32>} : memref<72x512xf32, #tpu.memory_space<vmem>>, vector<8x512xf32>,
    %c478_i32 = arith.constant 478 : i32
    %108 = tpu.dynamic_rotate %64 by %c478_i32 dim 1 : vector<8x512xf32>, i32 -> vector<8x512xf32>
    %c8_77 = arith.constant 8 : index
    %c0_78 = arith.constant 0 : index
    %c0_79 = arith.constant 0 : index
    %109 = vector.load %arg7[%c8_77, %c0_78, %c0_79] : memref<9x1x512xf32, #tpu.memory_space<vmem>>, vector<1x1x512xf32>
    %110 = vector.shape_cast %109 : vector<1x1x512xf32> to vector<1x512xf32>
    %111 = vector.broadcast %110 : vector<1x512xf32> to vector<8x512xf32>
    %112 = arith.mulf %108, %111 : vector<8x512xf32>
    %c64_80 = arith.constant 64 : index
    %c0_81 = arith.constant 0 : index
    %113 = vector.load %arg13[%c64_80, %c0_81] : memref<72x512xf32, #tpu.memory_space<vmem>>, vector<8x512xf32>
    tpu.vector_store %arg13[%c64_80, %c0_81], %112 {strides = array<i32>} : memref<72x512xf32, #tpu.memory_space<vmem>>, vector<8x512xf32>,
    %c0_82 = arith.constant 0 : index
    %c0_83 = arith.constant 0 : index
    %114 = vector.load %arg4[%c0_82, %c0_83] : memref<8x72xf32, #tpu.memory_space<vmem>>, vector<8x72xf32>
    %c0_84 = arith.constant 0 : index
    %c0_85 = arith.constant 0 : index
    %115 = vector.load %arg13[%c0_84, %c0_85] : memref<72x512xf32, #tpu.memory_space<vmem>>, vector<72x512xf32>
    %cst_86 = arith.constant dense<0.000000e+00> : vector<8x512xf32>
    %116 = tpu.matmul %114, %115, %cst_86 {dimension_numbers = #tpu.dot_dimension_numbers<[1], [0], [0], [1], [0, 0, 1, 1], [], []>} : vector<8x72xf32>, vector<72x512xf32>, vector<8x512xf32> -> vector<8x512xf32>
    %c0_87 = arith.constant 0 : index
    %c0_88 = arith.constant 0 : index
    %117 = vector.load %arg5[%c0_87, %c0_88] : memref<8x1xf32, #tpu.memory_space<vmem>>, vector<8x1xf32>
    %118 = vector.broadcast %117 : vector<8x1xf32> to vector<8x512xf32>
    %119 = arith.addf %116, %118 : vector<8x512xf32>
    %cst_89 = arith.constant 0.000000e+00 : f32
    %120 = vector.broadcast %cst_89 : f32 to vector<8x512xf32>
    %121 = arith.maximumf %119, %120 : vector<8x512xf32>
    %c0_90 = arith.constant 0 : index
    %c0_91 = arith.constant 0 : index
    %122 = vector.load %arg8[%c0_90, %c0_91] : memref<512x2xf32, #tpu.memory_space<vmem>>, vector<512x2xf32>
    %cst_92 = arith.constant dense<0.000000e+00> : vector<8x2xf32>
    %123 = tpu.matmul %121, %122, %cst_92 {dimension_numbers = #tpu.dot_dimension_numbers<[1], [0], [0], [1], [0, 0, 1, 1], [], []>} : vector<8x512xf32>, vector<512x2xf32>, vector<8x2xf32> -> vector<8x2xf32>
    %c0_93 = arith.constant 0 : index
    %c0_94 = arith.constant 0 : index
    %124 = vector.load %arg9[%c0_93, %c0_94] : memref<10x8xf32, #tpu.memory_space<vmem>>, vector<10x8xf32>
    %cst_95 = arith.constant dense<0.000000e+00> : vector<10x2xf32>
    %125 = tpu.matmul %124, %123, %cst_95 {dimension_numbers = #tpu.dot_dimension_numbers<[1], [0], [0], [1], [0, 0, 1, 1], [], []>} : vector<10x8xf32>, vector<8x2xf32>, vector<10x2xf32> -> vector<10x2xf32>
    %c0_96 = arith.constant 0 : index
    %c0_97 = arith.constant 0 : index
    %126 = vector.load %arg10[%c0_96, %c0_97] : memref<10x1xf32, #tpu.memory_space<vmem>>, vector<10x1xf32>
    %127 = vector.broadcast %126 : vector<10x1xf32> to vector<10x2xf32>
    %128 = arith.addf %125, %127 : vector<10x2xf32>
    %c0_98 = arith.constant 0 : index
    %c0_99 = arith.constant 0 : index
    %c0_100 = arith.constant 0 : index
    %129 = vector.load %arg11[%c0_98, %c0_99, %c0_100] : memref<1x10x2xf32, #tpu.memory_space<vmem>>, vector<1x10x2xf32>
    %130 = vector.shape_cast %129 : vector<1x10x2xf32> to vector<10x2xf32>
    %131 = vector.shape_cast %128 : vector<10x2xf32> to vector<1x10x2xf32>
    tpu.vector_store %arg11[%c0_98, %c0_99, %c0_100], %131 {strides = array<i32>} : memref<1x10x2xf32, #tpu.memory_space<vmem>>, vector<1x10x2xf32>,
    return
  }
  func.func @transform_0(%arg0: i32) -> (i32, i32, i32) {
    %c0_i32 = arith.constant 0 : i32
    %c0_i32_0 = arith.constant 0 : i32
    %c0_i32_1 = arith.constant 0 : i32
    return %arg0, %c0_i32, %c0_i32_0 : i32, i32, i32
  }
  func.func @transform_1(%arg0: i32) -> (i32, i32) {
    %c0_i32 = arith.constant 0 : i32
    %c0_i32_0 = arith.constant 0 : i32
    %c0_i32_1 = arith.constant 0 : i32
    return %c0_i32, %c0_i32_0 : i32, i32
  }
  func.func @transform_2(%arg0: i32) -> (i32, i32) {
    %c0_i32 = arith.constant 0 : i32
    %c0_i32_0 = arith.constant 0 : i32
    %c0_i32_1 = arith.constant 0 : i32
    return %c0_i32, %c0_i32_0 : i32, i32
  }
  func.func @transform_3(%arg0: i32) -> (i32, i32) {
    %c0_i32 = arith.constant 0 : i32
    %c0_i32_0 = arith.constant 0 : i32
    %c0_i32_1 = arith.constant 0 : i32
    return %c0_i32, %c0_i32_0 : i32, i32
  }
  func.func @transform_4(%arg0: i32) -> (i32, i32) {
    %c0_i32 = arith.constant 0 : i32
    %c0_i32_0 = arith.constant 0 : i32
    %c0_i32_1 = arith.constant 0 : i32
    return %c0_i32, %c0_i32_0 : i32, i32
  }
  func.func @transform_5(%arg0: i32) -> (i32, i32, i32) {
    %c0_i32 = arith.constant 0 : i32
    %c0_i32_0 = arith.constant 0 : i32
    %c0_i32_1 = arith.constant 0 : i32
    %c0_i32_2 = arith.constant 0 : i32
    return %c0_i32, %c0_i32_0, %c0_i32_1 : i32, i32, i32
  }
  func.func @transform_6(%arg0: i32) -> (i32, i32, i32) {
    %c0_i32 = arith.constant 0 : i32
    %c0_i32_0 = arith.constant 0 : i32
    %c0_i32_1 = arith.constant 0 : i32
    %c0_i32_2 = arith.constant 0 : i32
    return %c0_i32, %c0_i32_0, %c0_i32_1 : i32, i32, i32
  }
  func.func @transform_7(%arg0: i32) -> (i32, i32) {
    %c0_i32 = arith.constant 0 : i32
    %c0_i32_0 = arith.constant 0 : i32
    %c0_i32_1 = arith.constant 0 : i32
    return %c0_i32, %c0_i32_0 : i32, i32
  }
  func.func @transform_8(%arg0: i32) -> (i32, i32) {
    %c0_i32 = arith.constant 0 : i32
    %c0_i32_0 = arith.constant 0 : i32
    %c0_i32_1 = arith.constant 0 : i32
    return %c0_i32, %c0_i32_0 : i32, i32
  }
  func.func @transform_9(%arg0: i32) -> (i32, i32) {
    %c0_i32 = arith.constant 0 : i32
    %c0_i32_0 = arith.constant 0 : i32
    %c0_i32_1 = arith.constant 0 : i32
    return %c0_i32, %c0_i32_0 : i32, i32
  }
  func.func @transform_10(%arg0: i32) -> (i32, i32, i32) {
    %c0_i32 = arith.constant 0 : i32
    %c0_i32_0 = arith.constant 0 : i32
    %c0_i32_1 = arith.constant 0 : i32
    return %arg0, %c0_i32, %c0_i32_0 : i32, i32, i32
  }
}

</mosaic_0001>

<llo_original>
// kernel: checkpointable_forward.1
$region0: #{checkpointable_forward.1}
  #allocation0 [shape = 'u32[]', space=smem, size = 0x4, offset = 0x4, fixed_abs, tag = 'smem constant byte address 0x4 - core index']
  #allocation1 [shape = 'u32[144,128]{1,0:T(1,128)}', space=vmem, size = 0x12000, scoped, tag = 'internal scratch']
  #allocation2 [shape = 'f32[72,512]{1,0:T(8,128)}', space=vmem, size = 0x24000, scoped, tag = 'scratch operand']
  #allocation3 [shape = 'f32[72,512]{1,0:T(8,128)}', space=vmem, size = 0x24000, scoped, tag = 'scratch operand']
  %s0 = inlined_call_operand.vmem [shape: f32[1,8,512], index: 0, kind: input, shape index: {}]
  %s1 = inlined_call_operand.vmem [shape: f32[8,72], index: 1, kind: input, shape index: {}]
  %s2 = inlined_call_operand.vmem [shape: f32[8,1], index: 2, kind: input, shape index: {}]
  %s3 = inlined_call_operand.vmem [shape: f32[8,72], index: 3, kind: input, shape index: {}]
  %s4 = inlined_call_operand.vmem [shape: f32[8,1], index: 4, kind: input, shape index: {}]
  %s5 = inlined_call_operand.vmem [shape: f32[9,1,512], index: 5, kind: input, shape index: {}]
  %s6 = inlined_call_operand.vmem [shape: f32[9,1,512], index: 6, kind: input, shape index: {}]
  %s7 = inlined_call_operand.vmem [shape: f32[512,2], index: 7, kind: input, shape index: {}]
  %s8 = inlined_call_operand.vmem [shape: f32[10,8], index: 8, kind: input, shape index: {}]
  %s9 = inlined_call_operand.vmem [shape: f32[10,1], index: 9, kind: input, shape index: {}]
  %s10 = inlined_call_operand.vmem [shape: f32[1,10,2], index: 10, kind: output, shape index: {}]
  %s11 = sld [smem:[#allocation0]]
  $region50: #{checkpointable_forward.1} parent=0
    _
  %s13 = ssub.s32 1, %s11
  %s14 = scalar_select 0, %s13, %s11
  // Predicated region
  $region2: #{checkpointable_forward.1} parent=0 // pred_check
    _
  $region3: #{checkpointable_forward.1} parent=0 // pred_check_branch
    %16 = sbr.rel (0) target = $region5
  $region4: #{checkpointable_forward.1} parent=0 // pred_region
    _
  $region5: #{checkpointable_forward.1} parent=0 // pred_fallthru
    _
  // Predicated region
  $region6: #{checkpointable_forward.1} parent=0 // pred_check
    _
  $region7: #{checkpointable_forward.1} parent=0 // pred_check_branch
    %18 = sbr.rel (0) target = $region9
  $region8: #{checkpointable_forward.1} parent=0 // pred_region
    _
  $region9: #{checkpointable_forward.1} parent=0 // pred_fallthru
    _
  // Predicated region
  $region10: #{checkpointable_forward.1} parent=0 // pred_check
    _
  $region11: #{checkpointable_forward.1} parent=0 // pred_check_branch
    %20 = sbr.rel (0) target = $region13
  $region12: #{checkpointable_forward.1} parent=0 // pred_region
    _
  $region13: #{checkpointable_forward.1} parent=0 // pred_fallthru
    _
  // Predicated region
  $region14: #{checkpointable_forward.1} parent=0 // pred_check
    _
  $region15: #{checkpointable_forward.1} parent=0 // pred_check_branch
    %22 = sbr.rel (0) target = $region17
  $region16: #{checkpointable_forward.1} parent=0 // pred_region
    _
  $region17: #{checkpointable_forward.1} parent=0 // pred_fallthru
    _
  // Predicated region
  $region18: #{checkpointable_forward.1} parent=0 // pred_check
    _
  $region19: #{checkpointable_forward.1} parent=0 // pred_check_branch
    %24 = sbr.rel (0) target = $region21
  $region20: #{checkpointable_forward.1} parent=0 // pred_region
    _
  $region21: #{checkpointable_forward.1} parent=0 // pred_fallthru
    _
  // Predicated region
  $region22: #{checkpointable_forward.1} parent=0 // pred_check
    _
  $region23: #{checkpointable_forward.1} parent=0 // pred_check_branch
    %26 = sbr.rel (0) target = $region25
  $region24: #{checkpointable_forward.1} parent=0 // pred_region
    _
  $region25: #{checkpointable_forward.1} parent=0 // pred_fallthru
    _
  // Predicated region
  $region26: #{checkpointable_forward.1} parent=0 // pred_check
    _
  $region27: #{checkpointable_forward.1} parent=0 // pred_check_branch
    %28 = sbr.rel (0) target = $region29
  $region28: #{checkpointable_forward.1} parent=0 // pred_region
    _
  $region29: #{checkpointable_forward.1} parent=0 // pred_fallthru
    _
  // Predicated region
  $region30: #{checkpointable_forward.1} parent=0 // pred_check
    _
  $region31: #{checkpointable_forward.1} parent=0 // pred_check_branch
    %30 = sbr.rel (0) target = $region33
  $region32: #{checkpointable_forward.1} parent=0 // pred_region
    _
  $region33: #{checkpointable_forward.1} parent=0 // pred_fallthru
    _
  // Predicated region
  $region34: #{checkpointable_forward.1} parent=0 // pred_check
    _
  $region35: #{checkpointable_forward.1} parent=0 // pred_check_branch
    %32 = sbr.rel (0) target = $region37
  $region36: #{checkpointable_forward.1} parent=0 // pred_region
    _
  $region37: #{checkpointable_forward.1} parent=0 // pred_fallthru
    _
  // Predicated region
  $region38: #{checkpointable_forward.1} parent=0 // pred_check
    _
  $region39: #{checkpointable_forward.1} parent=0 // pred_check_branch
    %34 = sbr.rel (0) target = $region41
  $region40: #{checkpointable_forward.1} parent=0 // pred_region
    _
  $region41: #{checkpointable_forward.1} parent=0 // pred_fallthru
    _
  %v35 = vld [vmem:[%s0] sm:$0xff]
  %v36 = vld [vmem:[%s0 + $0x8] sm:$0xff]
  %v37 = vld [vmem:[%s0 + $0x10] sm:$0xff]
  %v38 = vld [vmem:[%s0 + $0x18] sm:$0xff]
  %39 = vrot.lane.b32.xlu0 %v35, 17
  %v40 = vpop.permute.xlu0 %39
  %41 = vrot.lane.b32.xlu0 %v36, 17
  %v42 = vpop.permute.xlu0 %41
  %43 = vrot.lane.b32.xlu0 %v37, 17
  %v44 = vpop.permute.xlu0 %43
  %45 = vrot.lane.b32.xlu0 %v38, 17
  %v46 = vpop.permute.xlu0 %45
  %v47 = vlaneseq
  %v48 = vand.u32 %v47, 127
  %vm49 = vcmp.lt.s32.totalorder %v48, 17
  %v50 = vsel %vm49, %v44, %v46
  %v51 = vsel %vm49, %v42, %v44
  %v52 = vsel %vm49, %v40, %v42
  %v53 = vsel %vm49, %v46, %v40
  %v54 = vld [vmem:[%s5] sm:$0xf]
  %v56 = vlaneseq
  %v57 = vshrl.u32 %v56, 7
  %v58 = vsub.s32 0, %v57
  %v59 = vrot.slane %v54, %v58
  %v60 = vlaneseq
  %v61 = vshrl.u32 %v60, 7
  %v62 = vsub.s32 1, %v61
  %v63 = vrot.slane %v54, %v62
  %v64 = vlaneseq
  %v65 = vshrl.u32 %v64, 7
  %v66 = vsub.s32 2, %v65
  %v67 = vrot.slane %v54, %v66
  %v68 = vlaneseq
  %v69 = vshrl.u32 %v68, 7
  %v70 = vsub.s32 3, %v69
  %v71 = vrot.slane %v54, %v70
  %v76 = vmul.f32 %v53, %v59
  %v77 = vmul.f32 %v52, %v63
  %v78 = vmul.f32 %v51, %v67
  %v79 = vmul.f32 %v50, %v71
  %80 = vst [vmem:[#allocation2] sm:$0xff] %v76
  %81 = vst [vmem:[#allocation2 + $0x8] sm:$0xff] %v77
  %82 = vst [vmem:[#allocation2 + $0x10] sm:$0xff] %v78
  %83 = vst [vmem:[#allocation2 + $0x18] sm:$0xff] %v79
  %84 = vrot.lane.b32.xlu0 %v35, 16
  %v85 = vpop.permute.xlu0 %84
  %86 = vrot.lane.b32.xlu0 %v36, 16
  %v87 = vpop.permute.xlu0 %86
  %88 = vrot.lane.b32.xlu0 %v37, 16
  %v89 = vpop.permute.xlu0 %88
  %90 = vrot.lane.b32.xlu0 %v38, 16
  %v91 = vpop.permute.xlu0 %90
  %vm92 = vcmp.lt.s32.totalorder %v48, 16
  %v93 = vsel %vm92, %v89, %v91
  %v94 = vsel %vm92, %v87, %v89
  %v95 = vsel %vm92, %v85, %v87
  %v96 = vsel %vm92, %v91, %v85
  %s97 = scalar_lea.vmem %s5, 4
  %v98 = vld [vmem:[%s97] sm:$0xf]
  %v100 = vlaneseq
  %v101 = vshrl.u32 %v100, 7
  %v102 = vsub.s32 0, %v101
  %v103 = vrot.slane %v98, %v102
  %v104 = vlaneseq
  %v105 = vshrl.u32 %v104, 7
  %v106 = vsub.s32 1, %v105
  %v107 = vrot.slane %v98, %v106
  %v108 = vlaneseq
  %v109 = vshrl.u32 %v108, 7
  %v110 = vsub.s32 2, %v109
  %v111 = vrot.slane %v98, %v110
  %v112 = vlaneseq
  %v113 = vshrl.u32 %v112, 7
  %v114 = vsub.s32 3, %v113
  %v115 = vrot.slane %v98, %v114
  %v120 = vmul.f32 %v96, %v103
  %v121 = vmul.f32 %v95, %v107
  %v122 = vmul.f32 %v94, %v111
  %v123 = vmul.f32 %v93, %v115
  %124 = vst [vmem:[#allocation2 + $0x20] sm:$0xff] %v120
  %125 = vst [vmem:[#allocation2 + $0x28] sm:$0xff] %v121
  %126 = vst [vmem:[#allocation2 + $0x30] sm:$0xff] %v122
  %127 = vst [vmem:[#allocation2 + $0x38] sm:$0xff] %v123
  %128 = vrot.lane.b32.xlu0 %v35, 15
  %v129 = vpop.permute.xlu0 %128
  %130 = vrot.lane.b32.xlu0 %v36, 15
  %v131 = vpop.permute.xlu0 %130
  %132 = vrot.lane.b32.xlu0 %v37, 15
  %v133 = vpop.permute.xlu0 %132
  %134 = vrot.lane.b32.xlu0 %v38, 15
  %v135 = vpop.permute.xlu0 %134
  %vm136 = vcmp.lt.s32.totalorder %v48, 15
  %v137 = vsel %vm136, %v133, %v135
  %v138 = vsel %vm136, %v131, %v133
  %v139 = vsel %vm136, %v129, %v131
  %v140 = vsel %vm136, %v135, %v129
  %s141 = scalar_lea.vmem %s5, 8
  %v142 = vld [vmem:[%s141] sm:$0xf]
  %v144 = vlaneseq
  %v145 = vshrl.u32 %v144, 7
  %v146 = vsub.s32 0, %v145
  %v147 = vrot.slane %v142, %v146
  %v148 = vlaneseq
  %v149 = vshrl.u32 %v148, 7
  %v150 = vsub.s32 1, %v149
  %v151 = vrot.slane %v142, %v150
  %v152 = vlaneseq
  %v153 = vshrl.u32 %v152, 7
  %v154 = vsub.s32 2, %v153
  %v155 = vrot.slane %v142, %v154
  %v156 = vlaneseq
  %v157 = vshrl.u32 %v156, 7
  %v158 = vsub.s32 3, %v157
  %v159 = vrot.slane %v142, %v158
  %v164 = vmul.f32 %v140, %v147
  %v165 = vmul.f32 %v139, %v151
  %v166 = vmul.f32 %v138, %v155
  %v167 = vmul.f32 %v137, %v159
  %168 = vst [vmem:[#allocation2 + $0x40] sm:$0xff] %v164
  %169 = vst [vmem:[#allocation2 + $0x48] sm:$0xff] %v165
  %170 = vst [vmem:[#allocation2 + $0x50] sm:$0xff] %v166
  %171 = vst [vmem:[#allocation2 + $0x58] sm:$0xff] %v167
  %172 = vrot.lane.b32.xlu0 %v35, 1
  %v173 = vpop.permute.xlu0 %172
  %174 = vrot.lane.b32.xlu0 %v36, 1
  %v175 = vpop.permute.xlu0 %174
  %176 = vrot.lane.b32.xlu0 %v37, 1
  %v177 = vpop.permute.xlu0 %176
  %178 = vrot.lane.b32.xlu0 %v38, 1
  %v179 = vpop.permute.xlu0 %178
  %vm180 = vcmp.lt.s32.totalorder %v48, 1
  %v181 = vsel %vm180, %v177, %v179
  %v182 = vsel %vm180, %v175, %v177
  %v183 = vsel %vm180, %v173, %v175
  %v184 = vsel %vm180, %v179, %v173
  %s185 = scalar_lea.vmem %s5, 12
  %v186 = vld [vmem:[%s185] sm:$0xf]
  %v188 = vlaneseq
  %v189 = vshrl.u32 %v188, 7
  %v190 = vsub.s32 0, %v189
  %v191 = vrot.slane %v186, %v190
  %v192 = vlaneseq
  %v193 = vshrl.u32 %v192, 7
  %v194 = vsub.s32 1, %v193
  %v195 = vrot.slane %v186, %v194
  %v196 = vlaneseq
  %v197 = vshrl.u32 %v196, 7
  %v198 = vsub.s32 2, %v197
  %v199 = vrot.slane %v186, %v198
  %v200 = vlaneseq
  %v201 = vshrl.u32 %v200, 7
  %v202 = vsub.s32 3, %v201
  %v203 = vrot.slane %v186, %v202
  %v208 = vmul.f32 %v184, %v191
  %v209 = vmul.f32 %v183, %v195
  %v210 = vmul.f32 %v182, %v199
  %v211 = vmul.f32 %v181, %v203
  %212 = vst [vmem:[#allocation2 + $0x60] sm:$0xff] %v208
  %213 = vst [vmem:[#allocation2 + $0x68] sm:$0xff] %v209
  %214 = vst [vmem:[#allocation2 + $0x70] sm:$0xff] %v210
  %215 = vst [vmem:[#allocation2 + $0x78] sm:$0xff] %v211
  %216 = vst [vmem:[#allocation2 + $0x80] sm:$0xff] %v35
  %217 = vst [vmem:[#allocation2 + $0x88] sm:$0xff] %v36
  %218 = vst [vmem:[#allocation2 + $0x90] sm:$0xff] %v37
  %219 = vst [vmem:[#allocation2 + $0x98] sm:$0xff] %v38
  %220 = vrot.lane.b32.xlu0 %v35, 127
  %v221 = vpop.permute.xlu0 %220
  %222 = vrot.lane.b32.xlu0 %v36, 127
  %v223 = vpop.permute.xlu0 %222
  %224 = vrot.lane.b32.xlu0 %v37, 127
  %v225 = vpop.permute.xlu0 %224
  %226 = vrot.lane.b32.xlu0 %v38, 127
  %v227 = vpop.permute.xlu0 %226
  %vm228 = vcmp.lt.s32.totalorder %v48, 127
  %v229 = vsel %vm228, %v225, %v227
  %v230 = vsel %vm228, %v223, %v225
  %v231 = vsel %vm228, %v221, %v223
  %v232 = vsel %vm228, %v227, %v221
  %s233 = scalar_lea.vmem %s5, 20
  %v234 = vld [vmem:[%s233] sm:$0xf]
  %v236 = vlaneseq
  %v237 = vshrl.u32 %v236, 7
  %v238 = vsub.s32 0, %v237
  %v239 = vrot.slane %v234, %v238
  %v240 = vlaneseq
  %v241 = vshrl.u32 %v240, 7
  %v242 = vsub.s32 1, %v241
  %v243 = vrot.slane %v234, %v242
  %v244 = vlaneseq
  %v245 = vshrl.u32 %v244, 7
  %v246 = vsub.s32 2, %v245
  %v247 = vrot.slane %v234, %v246
  %v248 = vlaneseq
  %v249 = vshrl.u32 %v248, 7
  %v250 = vsub.s32 3, %v249
  %v251 = vrot.slane %v234, %v250
  %v256 = vmul.f32 %v231, %v239
  %v257 = vmul.f32 %v230, %v243
  %v258 = vmul.f32 %v229, %v247
  %v259 = vmul.f32 %v232, %v251
  %260 = vst [vmem:[#allocation2 + $0xa0] sm:$0xff] %v256
  %261 = vst [vmem:[#allocation2 + $0xa8] sm:$0xff] %v257
  %262 = vst [vmem:[#allocation2 + $0xb0] sm:$0xff] %v258
  %263 = vst [vmem:[#allocation2 + $0xb8] sm:$0xff] %v259
  %264 = vrot.lane.b32.xlu0 %v35, 113
  %v265 = vpop.permute.xlu0 %264
  %266 = vrot.lane.b32.xlu0 %v36, 113
  %v267 = vpop.permute.xlu0 %266
  %268 = vrot.lane.b32.xlu0 %v37, 113
  %v269 = vpop.permute.xlu0 %268
  %270 = vrot.lane.b32.xlu0 %v38, 113
  %v271 = vpop.permute.xlu0 %270
  %vm272 = vcmp.lt.s32.totalorder %v48, 113
  %v273 = vsel %vm272, %v269, %v271
  %v274 = vsel %vm272, %v267, %v269
  %v275 = vsel %vm272, %v265, %v267
  %v276 = vsel %vm272, %v271, %v265
  %s277 = scalar_lea.vmem %s5, 24
  %v278 = vld [vmem:[%s277] sm:$0xf]
  %v280 = vlaneseq
  %v281 = vshrl.u32 %v280, 7
  %v282 = vsub.s32 0, %v281
  %v283 = vrot.slane %v278, %v282
  %v284 = vlaneseq
  %v285 = vshrl.u32 %v284, 7
  %v286 = vsub.s32 1, %v285
  %v287 = vrot.slane %v278, %v286
  %v288 = vlaneseq
  %v289 = vshrl.u32 %v288, 7
  %v290 = vsub.s32 2, %v289
  %v291 = vrot.slane %v278, %v290
  %v292 = vlaneseq
  %v293 = vshrl.u32 %v292, 7
  %v294 = vsub.s32 3, %v293
  %v295 = vrot.slane %v278, %v294
  %v300 = vmul.f32 %v275, %v283
  %v301 = vmul.f32 %v274, %v287
  %v302 = vmul.f32 %v273, %v291
  %v303 = vmul.f32 %v276, %v295
  %304 = vst [vmem:[#allocation2 + $0xc0] sm:$0xff] %v300
  %305 = vst [vmem:[#allocation2 + $0xc8] sm:$0xff] %v301
  %306 = vst [vmem:[#allocation2 + $0xd0] sm:$0xff] %v302
  %307 = vst [vmem:[#allocation2 + $0xd8] sm:$0xff] %v303
  %308 = vrot.lane.b32.xlu0 %v35, 112
  %v309 = vpop.permute.xlu0 %308
  %310 = vrot.lane.b32.xlu0 %v36, 112
  %v311 = vpop.permute.xlu0 %310
  %312 = vrot.lane.b32.xlu0 %v37, 112
  %v313 = vpop.permute.xlu0 %312
  %314 = vrot.lane.b32.xlu0 %v38, 112
  %v315 = vpop.permute.xlu0 %314
  %vm316 = vcmp.lt.s32.totalorder %v48, 112
  %v317 = vsel %vm316, %v313, %v315
  %v318 = vsel %vm316, %v311, %v313
  %v319 = vsel %vm316, %v309, %v311
  %v320 = vsel %vm316, %v315, %v309
  %s321 = scalar_lea.vmem %s5, 28
  %v322 = vld [vmem:[%s321] sm:$0xf]
  %v324 = vlaneseq
  %v325 = vshrl.u32 %v324, 7
  %v326 = vsub.s32 0, %v325
  %v327 = vrot.slane %v322, %v326
  %v328 = vlaneseq
  %v329 = vshrl.u32 %v328, 7
  %v330 = vsub.s32 1, %v329
  %v331 = vrot.slane %v322, %v330
  %v332 = vlaneseq
  %v333 = vshrl.u32 %v332, 7
  %v334 = vsub.s32 2, %v333
  %v335 = vrot.slane %v322, %v334
  %v336 = vlaneseq
  %v337 = vshrl.u32 %v336, 7
  %v338 = vsub.s32 3, %v337
  %v339 = vrot.slane %v322, %v338
  %v344 = vmul.f32 %v319, %v327
  %v345 = vmul.f32 %v318, %v331
  %v346 = vmul.f32 %v317, %v335
  %v347 = vmul.f32 %v320, %v339
  %348 = vst [vmem:[#allocation2 + $0xe0] sm:$0xff] %v344
  %349 = vst [vmem:[#allocation2 + $0xe8] sm:$0xff] %v345
  %350 = vst [vmem:[#allocation2 + $0xf0] sm:$0xff] %v346
  %351 = vst [vmem:[#allocation2 + $0xf8] sm:$0xff] %v347
  %352 = vrot.lane.b32.xlu0 %v35, 111
  %v353 = vpop.permute.xlu0 %352
  %354 = vrot.lane.b32.xlu0 %v36, 111
  %v355 = vpop.permute.xlu0 %354
  %356 = vrot.lane.b32.xlu0 %v37, 111
  %v357 = vpop.permute.xlu0 %356
  %358 = vrot.lane.b32.xlu0 %v38, 111
  %v359 = vpop.permute.xlu0 %358
  %vm360 = vcmp.lt.s32.totalorder %v48, 111
  %v361 = vsel %vm360, %v357, %v359
  %v362 = vsel %vm360, %v355, %v357
  %v363 = vsel %vm360, %v353, %v355
  %v364 = vsel %vm360, %v359, %v353
  %s365 = scalar_lea.vmem %s5, 32
  %v366 = vld [vmem:[%s365] sm:$0xf]
  %v368 = vlaneseq
  %v369 = vshrl.u32 %v368, 7
  %v370 = vsub.s32 0, %v369
  %v371 = vrot.slane %v366, %v370
  %v372 = vlaneseq
  %v373 = vshrl.u32 %v372, 7
  %v374 = vsub.s32 1, %v373
  %v375 = vrot.slane %v366, %v374
  %v376 = vlaneseq
  %v377 = vshrl.u32 %v376, 7
  %v378 = vsub.s32 2, %v377
  %v379 = vrot.slane %v366, %v378
  %v380 = vlaneseq
  %v381 = vshrl.u32 %v380, 7
  %v382 = vsub.s32 3, %v381
  %v383 = vrot.slane %v366, %v382
  %v388 = vmul.f32 %v363, %v371
  %v389 = vmul.f32 %v362, %v375
  %v390 = vmul.f32 %v361, %v379
  %v391 = vmul.f32 %v364, %v383
  %392 = vst [vmem:[#allocation2 + $0x100] sm:$0xff] %v388
  %393 = vst [vmem:[#allocation2 + $0x108] sm:$0xff] %v389
  %394 = vst [vmem:[#allocation2 + $0x110] sm:$0xff] %v390
  %395 = vst [vmem:[#allocation2 + $0x118] sm:$0xff] %v391
  %v396 = vld [vmem:[%s1] sm:$0xff]
  %v397 = vld [vmem:[#allocation2] sm:$0xff]
  %v398 = vld [vmem:[#allocation2 + $0x8] sm:$0xff]
  %v399 = vld [vmem:[#allocation2 + $0x10] sm:$0xff]
  %v400 = vld [vmem:[#allocation2 + $0x18] sm:$0xff]
  %v401 = vld [vmem:[#allocation2 + $0x20] sm:$0xff]
  %v402 = vld [vmem:[#allocation2 + $0x28] sm:$0xff]
  %v403 = vld [vmem:[#allocation2 + $0x30] sm:$0xff]
  %v404 = vld [vmem:[#allocation2 + $0x38] sm:$0xff]
  %v405 = vld [vmem:[#allocation2 + $0x40] sm:$0xff]
  %v406 = vld [vmem:[#allocation2 + $0x48] sm:$0xff]
  %v407 = vld [vmem:[#allocation2 + $0x50] sm:$0xff]
  %v408 = vld [vmem:[#allocation2 + $0x58] sm:$0xff]
  %v409 = vld [vmem:[#allocation2 + $0x60] sm:$0xff]
  %v410 = vld [vmem:[#allocation2 + $0x68] sm:$0xff]
  %v411 = vld [vmem:[#allocation2 + $0x70] sm:$0xff]
  %v412 = vld [vmem:[#allocation2 + $0x78] sm:$0xff]
  %v413 = vld [vmem:[#allocation2 + $0x80] sm:$0xff]
  %v414 = vld [vmem:[#allocation2 + $0x88] sm:$0xff]
  %v415 = vld [vmem:[#allocation2 + $0x90] sm:$0xff]
  %v416 = vld [vmem:[#allocation2 + $0x98] sm:$0xff]
  %v417 = vld [vmem:[#allocation2 + $0xa0] sm:$0xff]
  %v418 = vld [vmem:[#allocation2 + $0xa8] sm:$0xff]
  %v419 = vld [vmem:[#allocation2 + $0xb0] sm:$0xff]
  %v420 = vld [vmem:[#allocation2 + $0xb8] sm:$0xff]
  %v421 = vld [vmem:[#allocation2 + $0xc0] sm:$0xff]
  %v422 = vld [vmem:[#allocation2 + $0xc8] sm:$0xff]
  %v423 = vld [vmem:[#allocation2 + $0xd0] sm:$0xff]
  %v424 = vld [vmem:[#allocation2 + $0xd8] sm:$0xff]
  %v425 = vld [vmem:[#allocation2 + $0xe0] sm:$0xff]
  %v426 = vld [vmem:[#allocation2 + $0xe8] sm:$0xff]
  %v427 = vld [vmem:[#allocation2 + $0xf0] sm:$0xff]
  %v428 = vld [vmem:[#allocation2 + $0xf8] sm:$0xff]
  %v429 = vld [vmem:[#allocation2 + $0x100] sm:$0xff]
  %v430 = vld [vmem:[#allocation2 + $0x108] sm:$0xff]
  %v431 = vld [vmem:[#allocation2 + $0x110] sm:$0xff]
  %v432 = vld [vmem:[#allocation2 + $0x118] sm:$0xff]
  %v433 = vld [vmem:[%s2] sm:$0xff]
  %435 = vset.pattern.permute.xlu0 0
  %436 = vperm.xlu0 %435, %v433
  %v437 = vpop.permute.xlu0 %436
  %vm439 = vcmask 588800
  %v441 = vsel %vm439, %v396, 0
  %443 = vmatprep.subr.mxu0 %v398
  %444 = vmatpush1.msra.mxu0 %v397
  %445 = vmatprep.subr.mxu0 %v402
  %446 = vmatpush1.msra.mxu0 %v401
  %447 = vmatprep.subr.mxu0 %v406
  %448 = vmatpush1.msra.mxu0 %v405
  %449 = vmatprep.subr.mxu0 %v410
  %450 = vmatpush1.msra.mxu0 %v409
  %451 = vmatprep.subr.mxu0 %v414
  %452 = vmatpush1.msra.mxu0 %v413
  %453 = vmatprep.subr.mxu0 %v418
  %454 = vmatpush1.msra.mxu0 %v417
  %455 = vmatprep.subr.mxu0 %v422
  %456 = vmatpush1.msra.mxu0 %v421
  %457 = vmatprep.subr.mxu0 %v426
  %458 = vmatpush1.msra.mxu0 %v425
  %459 = vmatprep.subr.mxu0 %v430
  %460 = vmatpush1.msra.mxu0 %v429
  %461 = vmatprep.subr.mxu0 0.0
  %462 = vmatpush1.msra.mxu0 0.0
  %463 = vmatprep.subr.mxu0 0.0
  %464 = vmatpush1.msra.mxu0 0.0
  %465 = vmatprep.subr.mxu0 0.0
  %466 = vmatpush1.msra.mxu0 0.0
  %467 = vmatprep.subr.mxu0 0.0
  %468 = vmatpush1.msra.mxu0 0.0
  %469 = vmatprep.subr.mxu0 0.0
  %470 = vmatpush1.msra.mxu0 0.0
  %471 = vmatprep.subr.mxu0 0.0
  %472 = vmatpush1.msra.mxu0 0.0
  %473 = vmatprep.subr.mxu0 0.0
  %474 = vmatpush1.msra.mxu0 0.0
  %475 = vmatprep.subr.mxu0 0.0
  %476 = vmatpush1.msra.mxu0 0.0
  %477 = vmatprep.subr.mxu0 0.0
  %478 = vmatpush1.msra.mxu0 0.0
  %479 = vmatprep.subr.mxu0 0.0
  %480 = vmatpush1.msra.mxu0 0.0
  %481 = vmatprep.subr.mxu0 0.0
  %482 = vmatpush1.msra.mxu0 0.0
  %483 = vmatprep.subr.mxu0 0.0
  %484 = vmatpush1.msra.mxu0 0.0
  %485 = vmatprep.subr.mxu0 0.0
  %486 = vmatpush1.msra.mxu0 0.0
  %487 = vmatprep.subr.mxu0 0.0
  %488 = vmatpush1.msra.mxu0 0.0
  %489 = vmatprep.subr.mxu0 0.0
  %490 = vmatpush1.msra.mxu0 0.0
  %491 = vmatprep.subr.mxu0 0.0
  %492 = vmatpush1.msra.mxu0 0.0
  %493 = vmatprep.subr.mxu0 0.0
  %494 = vmatpush1.msra.mxu0 0.0
  %495 = vmatprep.subr.mxu0 0.0
  %496 = vmatpush1.msra.mxu0 0.0
  %497 = vmatprep.subr.mxu0 0.0
  %498 = vmatpush1.msra.mxu0 0.0
  %499 = vmatprep.subr.mxu0 0.0
  %500 = vmatpush1.msra.mxu0 0.0
  %501 = vmatprep.subr.mxu0 0.0
  %502 = vmatpush1.msra.mxu0 0.0
  %503 = vmatprep.subr.mxu0 0.0
  %504 = vmatpush1.msra.mxu0 0.0
  %505 = vmatprep.subr.mxu0 0.0
  %506 = vmatpush1.msra.mxu0 0.0
  %507 = vmatprep.mubr.f32.mxu0 0.0
  %508 = vmatmul.mubr.f32.gmra.mrb[0].mxu0 %v441
  %v509 = vpop.f32.mrb[0].mxu0
  %v510 = vadd.f32 %v437, %v509
  %v511 = vpop.f32.mrb[0].mxu0
  %v512 = vadd.f32 %v437, %v511
  %513 = vdwg.mxu0
  %514 = vmatprep.subr.mxu0 %v400
  %515 = vmatpush1.msra.mxu0 %v399
  %516 = vmatprep.subr.mxu0 %v404
  %517 = vmatpush1.msra.mxu0 %v403
  %518 = vmatprep.subr.mxu0 %v408
  %519 = vmatpush1.msra.mxu0 %v407
  %520 = vmatprep.subr.mxu0 %v412
  %521 = vmatpush1.msra.mxu0 %v411
  %522 = vmatprep.subr.mxu0 %v416
  %523 = vmatpush1.msra.mxu0 %v415
  %524 = vmatprep.subr.mxu0 %v420
  %525 = vmatpush1.msra.mxu0 %v419
  %526 = vmatprep.subr.mxu0 %v424
  %527 = vmatpush1.msra.mxu0 %v423
  %528 = vmatprep.subr.mxu0 %v428
  %529 = vmatpush1.msra.mxu0 %v427
  %530 = vmatprep.subr.mxu0 %v432
  %531 = vmatpush1.msra.mxu0 %v431
  %532 = vmatprep.subr.mxu0 0.0
  %533 = vmatpush1.msra.mxu0 0.0
  %534 = vmatprep.subr.mxu0 0.0
  %535 = vmatpush1.msra.mxu0 0.0
  %536 = vmatprep.subr.mxu0 0.0
  %537 = vmatpush1.msra.mxu0 0.0
  %538 = vmatprep.subr.mxu0 0.0
  %539 = vmatpush1.msra.mxu0 0.0
  %540 = vmatprep.subr.mxu0 0.0
  %541 = vmatpush1.msra.mxu0 0.0
  %542 = vmatprep.subr.mxu0 0.0
  %543 = vmatpush1.msra.mxu0 0.0
  %544 = vmatprep.subr.mxu0 0.0
  %545 = vmatpush1.msra.mxu0 0.0
  %546 = vmatprep.subr.mxu0 0.0
  %547 = vmatpush1.msra.mxu0 0.0
  %548 = vmatprep.subr.mxu0 0.0
  %549 = vmatpush1.msra.mxu0 0.0
  %550 = vmatprep.subr.mxu0 0.0
  %551 = vmatpush1.msra.mxu0 0.0
  %552 = vmatprep.subr.mxu0 0.0
  %553 = vmatpush1.msra.mxu0 0.0
  %554 = vmatprep.subr.mxu0 0.0
  %555 = vmatpush1.msra.mxu0 0.0
  %556 = vmatprep.subr.mxu0 0.0
  %557 = vmatpush1.msra.mxu0 0.0
  %558 = vmatprep.subr.mxu0 0.0
  %559 = vmatpush1.msra.mxu0 0.0
  %560 = vmatprep.subr.mxu0 0.0
  %561 = vmatpush1.msra.mxu0 0.0
  %562 = vmatprep.subr.mxu0 0.0
  %563 = vmatpush1.msra.mxu0 0.0
  %564 = vmatprep.subr.mxu0 0.0
  %565 = vmatpush1.msra.mxu0 0.0
  %566 = vmatprep.subr.mxu0 0.0
  %567 = vmatpush1.msra.mxu0 0.0
  %568 = vmatprep.subr.mxu0 0.0
  %569 = vmatpush1.msra.mxu0 0.0
  %570 = vmatprep.subr.mxu0 0.0
  %571 = vmatpush1.msra.mxu0 0.0
  %572 = vmatprep.subr.mxu0 0.0
  %573 = vmatpush1.msra.mxu0 0.0
  %574 = vmatprep.subr.mxu0 0.0
  %575 = vmatpush1.msra.mxu0 0.0
  %576 = vmatprep.subr.mxu0 0.0
  %577 = vmatpush1.msra.mxu0 0.0
  %578 = vmatprep.mubr.f32.mxu0 0.0
  %579 = vmatmul.mubr.f32.gmra.mrb[0].mxu0 %v441
  %v580 = vpop.f32.mrb[0].mxu0
  %v581 = vadd.f32 %v437, %v580
  %v582 = vpop.f32.mrb[0].mxu0
  %v583 = vadd.f32 %v437, %v582
  %584 = vdwg.mxu0
  %v585 = vmax.f32 %v510, 0.0
  %v586 = vmax.f32 %v512, 0.0
  %v587 = vmax.f32 %v581, 0.0
  %v588 = vmax.f32 %v583, 0.0
  %589 = vrot.lane.b32.xlu0 %v585, 127
  %v590 = vpop.permute.xlu0 %589
  %591 = vrot.lane.b32.xlu0 %v586, 127
  %v592 = vpop.permute.xlu0 %591
  %593 = vrot.lane.b32.xlu0 %v587, 127
  %v594 = vpop.permute.xlu0 %593
  %595 = vrot.lane.b32.xlu0 %v588, 127
  %v596 = vpop.permute.xlu0 %595
  %v597 = vsel %vm228, %v594, %v596
  %v598 = vsel %vm228, %v592, %v594
  %v599 = vsel %vm228, %v590, %v592
  %v600 = vsel %vm228, %v596, %v590
  %v601 = vmax.f32 %v585, %v599
  %v602 = vmax.f32 %v586, %v598
  %v603 = vmax.f32 %v587, %v597
  %v604 = vmax.f32 %v588, %v600
  %605 = vrot.lane.b32.xlu0 %v585, 112
  %v606 = vpop.permute.xlu0 %605
  %607 = vrot.lane.b32.xlu0 %v586, 112
  %v608 = vpop.permute.xlu0 %607
  %609 = vrot.lane.b32.xlu0 %v587, 112
  %v610 = vpop.permute.xlu0 %609
  %611 = vrot.lane.b32.xlu0 %v588, 112
  %v612 = vpop.permute.xlu0 %611
  %v613 = vsel %vm316, %v610, %v612
  %v614 = vsel %vm316, %v608, %v610
  %v615 = vsel %vm316, %v606, %v608
  %v616 = vsel %vm316, %v612, %v606
  %617 = vrot.lane.b32.xlu0 %v585, 111
  %v618 = vpop.permute.xlu0 %617
  %619 = vrot.lane.b32.xlu0 %v586, 111
  %v620 = vpop.permute.xlu0 %619
  %621 = vrot.lane.b32.xlu0 %v587, 111
  %v622 = vpop.permute.xlu0 %621
  %623 = vrot.lane.b32.xlu0 %v588, 111
  %v624 = vpop.permute.xlu0 %623
  %v625 = vsel %vm360, %v622, %v624
  %v626 = vsel %vm360, %v620, %v622
  %v627 = vsel %vm360, %v618, %v620
  %v628 = vsel %vm360, %v624, %v618
  %v629 = vmax.f32 %v615, %v627
  %v630 = vmax.f32 %v614, %v626
  %v631 = vmax.f32 %v613, %v625
  %v632 = vmax.f32 %v616, %v628
  %v633 = vmax.f32 %v601, %v629
  %v634 = vmax.f32 %v602, %v630
  %v635 = vmax.f32 %v603, %v631
  %v636 = vmax.f32 %v604, %v632
  %637 = vrot.lane.b32.xlu0 %v633, 34
  %v638 = vpop.permute.xlu0 %637
  %639 = vrot.lane.b32.xlu0 %v634, 34
  %v640 = vpop.permute.xlu0 %639
  %641 = vrot.lane.b32.xlu0 %v635, 34
  %v642 = vpop.permute.xlu0 %641
  %643 = vrot.lane.b32.xlu0 %v636, 34
  %v644 = vpop.permute.xlu0 %643
  %vm645 = vcmp.lt.s32.totalorder %v48, 34
  %v646 = vsel %vm645, %v642, %v644
  %v647 = vsel %vm645, %v640, %v642
  %v648 = vsel %vm645, %v638, %v640
  %v649 = vsel %vm645, %v644, %v638
  %v650 = vld [vmem:[%s6] sm:$0xf]
  %v652 = vlaneseq
  %v653 = vshrl.u32 %v652, 7
  %v654 = vsub.s32 0, %v653
  %v655 = vrot.slane %v650, %v654
  %v656 = vlaneseq
  %v657 = vshrl.u32 %v656, 7
  %v658 = vsub.s32 1, %v657
  %v659 = vrot.slane %v650, %v658
  %v660 = vlaneseq
  %v661 = vshrl.u32 %v660, 7
  %v662 = vsub.s32 2, %v661
  %v663 = vrot.slane %v650, %v662
  %v664 = vlaneseq
  %v665 = vshrl.u32 %v664, 7
  %v666 = vsub.s32 3, %v665
  %v667 = vrot.slane %v650, %v666
  %v672 = vmul.f32 %v649, %v655
  %v673 = vmul.f32 %v648, %v659
  %v674 = vmul.f32 %v647, %v663
  %v675 = vmul.f32 %v646, %v667
  %676 = vst [vmem:[#allocation3] sm:$0xff] %v672
  %677 = vst [vmem:[#allocation3 + $0x8] sm:$0xff] %v673
  %678 = vst [vmem:[#allocation3 + $0x10] sm:$0xff] %v674
  %679 = vst [vmem:[#allocation3 + $0x18] sm:$0xff] %v675
  %680 = vrot.lane.b32.xlu0 %v633, 32
  %v681 = vpop.permute.xlu0 %680
  %682 = vrot.lane.b32.xlu0 %v634, 32
  %v683 = vpop.permute.xlu0 %682
  %684 = vrot.lane.b32.xlu0 %v635, 32
  %v685 = vpop.permute.xlu0 %684
  %686 = vrot.lane.b32.xlu0 %v636, 32
  %v687 = vpop.permute.xlu0 %686
  %vm688 = vcmp.lt.s32.totalorder %v48, 32
  %v689 = vsel %vm688, %v685, %v687
  %v690 = vsel %vm688, %v683, %v685
  %v691 = vsel %vm688, %v681, %v683
  %v692 = vsel %vm688, %v687, %v681
  %s693 = scalar_lea.vmem %s6, 4
  %v694 = vld [vmem:[%s693] sm:$0xf]
  %v696 = vlaneseq
  %v697 = vshrl.u32 %v696, 7
  %v698 = vsub.s32 0, %v697
  %v699 = vrot.slane %v694, %v698
  %v700 = vlaneseq
  %v701 = vshrl.u32 %v700, 7
  %v702 = vsub.s32 1, %v701
  %v703 = vrot.slane %v694, %v702
  %v704 = vlaneseq
  %v705 = vshrl.u32 %v704, 7
  %v706 = vsub.s32 2, %v705
  %v707 = vrot.slane %v694, %v706
  %v708 = vlaneseq
  %v709 = vshrl.u32 %v708, 7
  %v710 = vsub.s32 3, %v709
  %v711 = vrot.slane %v694, %v710
  %v716 = vmul.f32 %v692, %v699
  %v717 = vmul.f32 %v691, %v703
  %v718 = vmul.f32 %v690, %v707
  %v719 = vmul.f32 %v689, %v711
  %720 = vst [vmem:[#allocation3 + $0x20] sm:$0xff] %v716
  %721 = vst [vmem:[#allocation3 + $0x28] sm:$0xff] %v717
  %722 = vst [vmem:[#allocation3 + $0x30] sm:$0xff] %v718
  %723 = vst [vmem:[#allocation3 + $0x38] sm:$0xff] %v719
  %724 = vrot.lane.b32.xlu0 %v633, 30
  %v725 = vpop.permute.xlu0 %724
  %726 = vrot.lane.b32.xlu0 %v634, 30
  %v727 = vpop.permute.xlu0 %726
  %728 = vrot.lane.b32.xlu0 %v635, 30
  %v729 = vpop.permute.xlu0 %728
  %730 = vrot.lane.b32.xlu0 %v636, 30
  %v731 = vpop.permute.xlu0 %730
  %vm732 = vcmp.lt.s32.totalorder %v48, 30
  %v733 = vsel %vm732, %v729, %v731
  %v734 = vsel %vm732, %v727, %v729
  %v735 = vsel %vm732, %v725, %v727
  %v736 = vsel %vm732, %v731, %v725
  %s737 = scalar_lea.vmem %s6, 8
  %v738 = vld [vmem:[%s737] sm:$0xf]
  %v740 = vlaneseq
  %v741 = vshrl.u32 %v740, 7
  %v742 = vsub.s32 0, %v741
  %v743 = vrot.slane %v738, %v742
  %v744 = vlaneseq
  %v745 = vshrl.u32 %v744, 7
  %v746 = vsub.s32 1, %v745
  %v747 = vrot.slane %v738, %v746
  %v748 = vlaneseq
  %v749 = vshrl.u32 %v748, 7
  %v750 = vsub.s32 2, %v749
  %v751 = vrot.slane %v738, %v750
  %v752 = vlaneseq
  %v753 = vshrl.u32 %v752, 7
  %v754 = vsub.s32 3, %v753
  %v755 = vrot.slane %v738, %v754
  %v760 = vmul.f32 %v736, %v743
  %v761 = vmul.f32 %v735, %v747
  %v762 = vmul.f32 %v734, %v751
  %v763 = vmul.f32 %v733, %v755
  %764 = vst [vmem:[#allocation3 + $0x40] sm:$0xff] %v760
  %765 = vst [vmem:[#allocation3 + $0x48] sm:$0xff] %v761
  %766 = vst [vmem:[#allocation3 + $0x50] sm:$0xff] %v762
  %767 = vst [vmem:[#allocation3 + $0x58] sm:$0xff] %v763
  %768 = vrot.lane.b32.xlu0 %v633, 2
  %v769 = vpop.permute.xlu0 %768
  %770 = vrot.lane.b32.xlu0 %v634, 2
  %v771 = vpop.permute.xlu0 %770
  %772 = vrot.lane.b32.xlu0 %v635, 2
  %v773 = vpop.permute.xlu0 %772
  %774 = vrot.lane.b32.xlu0 %v636, 2
  %v775 = vpop.permute.xlu0 %774
  %vm776 = vcmp.lt.s32.totalorder %v48, 2
  %v777 = vsel %vm776, %v773, %v775
  %v778 = vsel %vm776, %v771, %v773
  %v779 = vsel %vm776, %v769, %v771
  %v780 = vsel %vm776, %v775, %v769
  %s781 = scalar_lea.vmem %s6, 12
  %v782 = vld [vmem:[%s781] sm:$0xf]
  %v784 = vlaneseq
  %v785 = vshrl.u32 %v784, 7
  %v786 = vsub.s32 0, %v785
  %v787 = vrot.slane %v782, %v786
  %v788 = vlaneseq
  %v789 = vshrl.u32 %v788, 7
  %v790 = vsub.s32 1, %v789
  %v791 = vrot.slane %v782, %v790
  %v792 = vlaneseq
  %v793 = vshrl.u32 %v792, 7
  %v794 = vsub.s32 2, %v793
  %v795 = vrot.slane %v782, %v794
  %v796 = vlaneseq
  %v797 = vshrl.u32 %v796, 7
  %v798 = vsub.s32 3, %v797
  %v799 = vrot.slane %v782, %v798
  %v804 = vmul.f32 %v780, %v787
  %v805 = vmul.f32 %v779, %v791
  %v806 = vmul.f32 %v778, %v795
  %v807 = vmul.f32 %v777, %v799
  %808 = vst [vmem:[#allocation3 + $0x60] sm:$0xff] %v804
  %809 = vst [vmem:[#allocation3 + $0x68] sm:$0xff] %v805
  %810 = vst [vmem:[#allocation3 + $0x70] sm:$0xff] %v806
  %811 = vst [vmem:[#allocation3 + $0x78] sm:$0xff] %v807
  %812 = vst [vmem:[#allocation3 + $0x80] sm:$0xff] %v633
  %813 = vst [vmem:[#allocation3 + $0x88] sm:$0xff] %v634
  %814 = vst [vmem:[#allocation3 + $0x90] sm:$0xff] %v635
  %815 = vst [vmem:[#allocation3 + $0x98] sm:$0xff] %v636
  %816 = vrot.lane.b32.xlu0 %v633, 126
  %v817 = vpop.permute.xlu0 %816
  %818 = vrot.lane.b32.xlu0 %v634, 126
  %v819 = vpop.permute.xlu0 %818
  %820 = vrot.lane.b32.xlu0 %v635, 126
  %v821 = vpop.permute.xlu0 %820
  %822 = vrot.lane.b32.xlu0 %v636, 126
  %v823 = vpop.permute.xlu0 %822
  %vm824 = vcmp.lt.s32.totalorder %v48, 126
  %v825 = vsel %vm824, %v821, %v823
  %v826 = vsel %vm824, %v819, %v821
  %v827 = vsel %vm824, %v817, %v819
  %v828 = vsel %vm824, %v823, %v817
  %s829 = scalar_lea.vmem %s6, 20
  %v830 = vld [vmem:[%s829] sm:$0xf]
  %v832 = vlaneseq
  %v833 = vshrl.u32 %v832, 7
  %v834 = vsub.s32 0, %v833
  %v835 = vrot.slane %v830, %v834
  %v836 = vlaneseq
  %v837 = vshrl.u32 %v836, 7
  %v838 = vsub.s32 1, %v837
  %v839 = vrot.slane %v830, %v838
  %v840 = vlaneseq
  %v841 = vshrl.u32 %v840, 7
  %v842 = vsub.s32 2, %v841
  %v843 = vrot.slane %v830, %v842
  %v844 = vlaneseq
  %v845 = vshrl.u32 %v844, 7
  %v846 = vsub.s32 3, %v845
  %v847 = vrot.slane %v830, %v846
  %v852 = vmul.f32 %v827, %v835
  %v853 = vmul.f32 %v826, %v839
  %v854 = vmul.f32 %v825, %v843
  %v855 = vmul.f32 %v828, %v847
  %856 = vst [vmem:[#allocation3 + $0xa0] sm:$0xff] %v852
  %857 = vst [vmem:[#allocation3 + $0xa8] sm:$0xff] %v853
  %858 = vst [vmem:[#allocation3 + $0xb0] sm:$0xff] %v854
  %859 = vst [vmem:[#allocation3 + $0xb8] sm:$0xff] %v855
  %860 = vrot.lane.b32.xlu0 %v633, 98
  %v861 = vpop.permute.xlu0 %860
  %862 = vrot.lane.b32.xlu0 %v634, 98
  %v863 = vpop.permute.xlu0 %862
  %864 = vrot.lane.b32.xlu0 %v635, 98
  %v865 = vpop.permute.xlu0 %864
  %866 = vrot.lane.b32.xlu0 %v636, 98
  %v867 = vpop.permute.xlu0 %866
  %vm868 = vcmp.lt.s32.totalorder %v48, 98
  %v869 = vsel %vm868, %v865, %v867
  %v870 = vsel %vm868, %v863, %v865
  %v871 = vsel %vm868, %v861, %v863
  %v872 = vsel %vm868, %v867, %v861
  %s873 = scalar_lea.vmem %s6, 24
  %v874 = vld [vmem:[%s873] sm:$0xf]
  %v876 = vlaneseq
  %v877 = vshrl.u32 %v876, 7
  %v878 = vsub.s32 0, %v877
  %v879 = vrot.slane %v874, %v878
  %v880 = vlaneseq
  %v881 = vshrl.u32 %v880, 7
  %v882 = vsub.s32 1, %v881
  %v883 = vrot.slane %v874, %v882
  %v884 = vlaneseq
  %v885 = vshrl.u32 %v884, 7
  %v886 = vsub.s32 2, %v885
  %v887 = vrot.slane %v874, %v886
  %v888 = vlaneseq
  %v889 = vshrl.u32 %v888, 7
  %v890 = vsub.s32 3, %v889
  %v891 = vrot.slane %v874, %v890
  %v896 = vmul.f32 %v871, %v879
  %v897 = vmul.f32 %v870, %v883
  %v898 = vmul.f32 %v869, %v887
  %v899 = vmul.f32 %v872, %v891
  %900 = vst [vmem:[#allocation3 + $0xc0] sm:$0xff] %v896
  %901 = vst [vmem:[#allocation3 + $0xc8] sm:$0xff] %v897
  %902 = vst [vmem:[#allocation3 + $0xd0] sm:$0xff] %v898
  %903 = vst [vmem:[#allocation3 + $0xd8] sm:$0xff] %v899
  %904 = vrot.lane.b32.xlu0 %v633, 96
  %v905 = vpop.permute.xlu0 %904
  %906 = vrot.lane.b32.xlu0 %v634, 96
  %v907 = vpop.permute.xlu0 %906
  %908 = vrot.lane.b32.xlu0 %v635, 96
  %v909 = vpop.permute.xlu0 %908
  %910 = vrot.lane.b32.xlu0 %v636, 96
  %v911 = vpop.permute.xlu0 %910
  %vm912 = vcmp.lt.s32.totalorder %v48, 96
  %v913 = vsel %vm912, %v909, %v911
  %v914 = vsel %vm912, %v907, %v909
  %v915 = vsel %vm912, %v905, %v907
  %v916 = vsel %vm912, %v911, %v905
  %s917 = scalar_lea.vmem %s6, 28
  %v918 = vld [vmem:[%s917] sm:$0xf]
  %v920 = vlaneseq
  %v921 = vshrl.u32 %v920, 7
  %v922 = vsub.s32 0, %v921
  %v923 = vrot.slane %v918, %v922
  %v924 = vlaneseq
  %v925 = vshrl.u32 %v924, 7
  %v926 = vsub.s32 1, %v925
  %v927 = vrot.slane %v918, %v926
  %v928 = vlaneseq
  %v929 = vshrl.u32 %v928, 7
  %v930 = vsub.s32 2, %v929
  %v931 = vrot.slane %v918, %v930
  %v932 = vlaneseq
  %v933 = vshrl.u32 %v932, 7
  %v934 = vsub.s32 3, %v933
  %v935 = vrot.slane %v918, %v934
  %v940 = vmul.f32 %v915, %v923
  %v941 = vmul.f32 %v914, %v927
  %v942 = vmul.f32 %v913, %v931
  %v943 = vmul.f32 %v916, %v935
  %944 = vst [vmem:[#allocation3 + $0xe0] sm:$0xff] %v940
  %945 = vst [vmem:[#allocation3 + $0xe8] sm:$0xff] %v941
  %946 = vst [vmem:[#allocation3 + $0xf0] sm:$0xff] %v942
  %947 = vst [vmem:[#allocation3 + $0xf8] sm:$0xff] %v943
  %948 = vrot.lane.b32.xlu0 %v633, 94
  %v949 = vpop.permute.xlu0 %948
  %950 = vrot.lane.b32.xlu0 %v634, 94
  %v951 = vpop.permute.xlu0 %950
  %952 = vrot.lane.b32.xlu0 %v635, 94
  %v953 = vpop.permute.xlu0 %952
  %954 = vrot.lane.b32.xlu0 %v636, 94
  %v955 = vpop.permute.xlu0 %954
  %vm956 = vcmp.lt.s32.totalorder %v48, 94
  %v957 = vsel %vm956, %v953, %v955
  %v958 = vsel %vm956, %v951, %v953
  %v959 = vsel %vm956, %v949, %v951
  %v960 = vsel %vm956, %v955, %v949
  %s961 = scalar_lea.vmem %s6, 32
  %v962 = vld [vmem:[%s961] sm:$0xf]
  %v964 = vlaneseq
  %v965 = vshrl.u32 %v964, 7
  %v966 = vsub.s32 0, %v965
  %v967 = vrot.slane %v962, %v966
  %v968 = vlaneseq
  %v969 = vshrl.u32 %v968, 7
  %v970 = vsub.s32 1, %v969
  %v971 = vrot.slane %v962, %v970
  %v972 = vlaneseq
  %v973 = vshrl.u32 %v972, 7
  %v974 = vsub.s32 2, %v973
  %v975 = vrot.slane %v962, %v974
  %v976 = vlaneseq
  %v977 = vshrl.u32 %v976, 7
  %v978 = vsub.s32 3, %v977
  %v979 = vrot.slane %v962, %v978
  %v984 = vmul.f32 %v959, %v967
  %v985 = vmul.f32 %v958, %v971
  %v986 = vmul.f32 %v957, %v975
  %v987 = vmul.f32 %v960, %v979
  %988 = vst [vmem:[#allocation3 + $0x100] sm:$0xff] %v984
  %989 = vst [vmem:[#allocation3 + $0x108] sm:$0xff] %v985
  %990 = vst [vmem:[#allocation3 + $0x110] sm:$0xff] %v986
  %991 = vst [vmem:[#allocation3 + $0x118] sm:$0xff] %v987
  %v992 = vld [vmem:[%s3] sm:$0xff]
  %v993 = vld [vmem:[#allocation3] sm:$0xff]
  %v994 = vld [vmem:[#allocation3 + $0x8] sm:$0xff]
  %v995 = vld [vmem:[#allocation3 + $0x10] sm:$0xff]
  %v996 = vld [vmem:[#allocation3 + $0x18] sm:$0xff]
  %v997 = vld [vmem:[#allocation3 + $0x20] sm:$0xff]
  %v998 = vld [vmem:[#allocation3 + $0x28] sm:$0xff]
  %v999 = vld [vmem:[#allocation3 + $0x30] sm:$0xff]
  %v1000 = vld [vmem:[#allocation3 + $0x38] sm:$0xff]
  %v1001 = vld [vmem:[#allocation3 + $0x40] sm:$0xff]
  %v1002 = vld [vmem:[#allocation3 + $0x48] sm:$0xff]
  %v1003 = vld [vmem:[#allocation3 + $0x50] sm:$0xff]
  %v1004 = vld [vmem:[#allocation3 + $0x58] sm:$0xff]
  %v1005 = vld [vmem:[#allocation3 + $0x60] sm:$0xff]
  %v1006 = vld [vmem:[#allocation3 + $0x68] sm:$0xff]
  %v1007 = vld [vmem:[#allocation3 + $0x70] sm:$0xff]
  %v1008 = vld [vmem:[#allocation3 + $0x78] sm:$0xff]
  %v1009 = vld [vmem:[#allocation3 + $0x80] sm:$0xff]
  %v1010 = vld [vmem:[#allocation3 + $0x88] sm:$0xff]
  %v1011 = vld [vmem:[#allocation3 + $0x90] sm:$0xff]
  %v1012 = vld [vmem:[#allocation3 + $0x98] sm:$0xff]
  %v1013 = vld [vmem:[#allocation3 + $0xa0] sm:$0xff]
  %v1014 = vld [vmem:[#allocation3 + $0xa8] sm:$0xff]
  %v1015 = vld [vmem:[#allocation3 + $0xb0] sm:$0xff]
  %v1016 = vld [vmem:[#allocation3 + $0xb8] sm:$0xff]
  %v1017 = vld [vmem:[#allocation3 + $0xc0] sm:$0xff]
  %v1018 = vld [vmem:[#allocation3 + $0xc8] sm:$0xff]
  %v1019 = vld [vmem:[#allocation3 + $0xd0] sm:$0xff]
  %v1020 = vld [vmem:[#allocation3 + $0xd8] sm:$0xff]
  %v1021 = vld [vmem:[#allocation3 + $0xe0] sm:$0xff]
  %v1022 = vld [vmem:[#allocation3 + $0xe8] sm:$0xff]
  %v1023 = vld [vmem:[#allocation3 + $0xf0] sm:$0xff]
  %v1024 = vld [vmem:[#allocation3 + $0xf8] sm:$0xff]
  %v1025 = vld [vmem:[#allocation3 + $0x100] sm:$0xff]
  %v1026 = vld [vmem:[#allocation3 + $0x108] sm:$0xff]
  %v1027 = vld [vmem:[#allocation3 + $0x110] sm:$0xff]
  %v1028 = vld [vmem:[#allocation3 + $0x118] sm:$0xff]
  %v1029 = vld [vmem:[%s4] sm:$0xff]
  %1031 = vset.pattern.permute.xlu0 0
  %1032 = vperm.xlu0 %1031, %v1029
  %v1033 = vpop.permute.xlu0 %1032
  %v1036 = vsel %vm439, %v992, 0
  %1038 = vmatprep.subr.mxu0 %v994
  %1039 = vmatpush1.msra.mxu0 %v993
  %1040 = vmatprep.subr.mxu0 %v998
  %1041 = vmatpush1.msra.mxu0 %v997
  %1042 = vmatprep.subr.mxu0 %v1002
  %1043 = vmatpush1.msra.mxu0 %v1001
  %1044 = vmatprep.subr.mxu0 %v1006
  %1045 = vmatpush1.msra.mxu0 %v1005
  %1046 = vmatprep.subr.mxu0 %v1010
  %1047 = vmatpush1.msra.mxu0 %v1009
  %1048 = vmatprep.subr.mxu0 %v1014
  %1049 = vmatpush1.msra.mxu0 %v1013
  %1050 = vmatprep.subr.mxu0 %v1018
  %1051 = vmatpush1.msra.mxu0 %v1017
  %1052 = vmatprep.subr.mxu0 %v1022
  %1053 = vmatpush1.msra.mxu0 %v1021
  %1054 = vmatprep.subr.mxu0 %v1026
  %1055 = vmatpush1.msra.mxu0 %v1025
  %1056 = vmatprep.subr.mxu0 0.0
  %1057 = vmatpush1.msra.mxu0 0.0
  %1058 = vmatprep.subr.mxu0 0.0
  %1059 = vmatpush1.msra.mxu0 0.0
  %1060 = vmatprep.subr.mxu0 0.0
  %1061 = vmatpush1.msra.mxu0 0.0
  %1062 = vmatprep.subr.mxu0 0.0
  %1063 = vmatpush1.msra.mxu0 0.0
  %1064 = vmatprep.subr.mxu0 0.0
  %1065 = vmatpush1.msra.mxu0 0.0
  %1066 = vmatprep.subr.mxu0 0.0
  %1067 = vmatpush1.msra.mxu0 0.0
  %1068 = vmatprep.subr.mxu0 0.0
  %1069 = vmatpush1.msra.mxu0 0.0
  %1070 = vmatprep.subr.mxu0 0.0
  %1071 = vmatpush1.msra.mxu0 0.0
  %1072 = vmatprep.subr.mxu0 0.0
  %1073 = vmatpush1.msra.mxu0 0.0
  %1074 = vmatprep.subr.mxu0 0.0
  %1075 = vmatpush1.msra.mxu0 0.0
  %1076 = vmatprep.subr.mxu0 0.0
  %1077 = vmatpush1.msra.mxu0 0.0
  %1078 = vmatprep.subr.mxu0 0.0
  %1079 = vmatpush1.msra.mxu0 0.0
  %1080 = vmatprep.subr.mxu0 0.0
  %1081 = vmatpush1.msra.mxu0 0.0
  %1082 = vmatprep.subr.mxu0 0.0
  %1083 = vmatpush1.msra.mxu0 0.0
  %1084 = vmatprep.subr.mxu0 0.0
  %1085 = vmatpush1.msra.mxu0 0.0
  %1086 = vmatprep.subr.mxu0 0.0
  %1087 = vmatpush1.msra.mxu0 0.0
  %1088 = vmatprep.subr.mxu0 0.0
  %1089 = vmatpush1.msra.mxu0 0.0
  %1090 = vmatprep.subr.mxu0 0.0
  %1091 = vmatpush1.msra.mxu0 0.0
  %1092 = vmatprep.subr.mxu0 0.0
  %1093 = vmatpush1.msra.mxu0 0.0
  %1094 = vmatprep.subr.mxu0 0.0
  %1095 = vmatpush1.msra.mxu0 0.0
  %1096 = vmatprep.subr.mxu0 0.0
  %1097 = vmatpush1.msra.mxu0 0.0
  %1098 = vmatprep.subr.mxu0 0.0
  %1099 = vmatpush1.msra.mxu0 0.0
  %1100 = vmatprep.subr.mxu0 0.0
  %1101 = vmatpush1.msra.mxu0 0.0
  %1102 = vmatprep.mubr.f32.mxu0 0.0
  %1103 = vmatmul.mubr.f32.gmra.mrb[0].mxu0 %v1036
  %v1104 = vpop.f32.mrb[0].mxu0
  %v1105 = vadd.f32 %v1033, %v1104
  %v1106 = vpop.f32.mrb[0].mxu0
  %v1107 = vadd.f32 %v1033, %v1106
  %1108 = vdwg.mxu0
  %1109 = vmatprep.subr.mxu0 %v996
  %1110 = vmatpush1.msra.mxu0 %v995
  %1111 = vmatprep.subr.mxu0 %v1000
  %1112 = vmatpush1.msra.mxu0 %v999
  %1113 = vmatprep.subr.mxu0 %v1004
  %1114 = vmatpush1.msra.mxu0 %v1003
  %1115 = vmatprep.subr.mxu0 %v1008
  %1116 = vmatpush1.msra.mxu0 %v1007
  %1117 = vmatprep.subr.mxu0 %v1012
  %1118 = vmatpush1.msra.mxu0 %v1011
  %1119 = vmatprep.subr.mxu0 %v1016
  %1120 = vmatpush1.msra.mxu0 %v1015
  %1121 = vmatprep.subr.mxu0 %v1020
  %1122 = vmatpush1.msra.mxu0 %v1019
  %1123 = vmatprep.subr.mxu0 %v1024
  %1124 = vmatpush1.msra.mxu0 %v1023
  %1125 = vmatprep.subr.mxu0 %v1028
  %1126 = vmatpush1.msra.mxu0 %v1027
  %1127 = vmatprep.subr.mxu0 0.0
  %1128 = vmatpush1.msra.mxu0 0.0
  %1129 = vmatprep.subr.mxu0 0.0
  %1130 = vmatpush1.msra.mxu0 0.0
  %1131 = vmatprep.subr.mxu0 0.0
  %1132 = vmatpush1.msra.mxu0 0.0
  %1133 = vmatprep.subr.mxu0 0.0
  %1134 = vmatpush1.msra.mxu0 0.0
  %1135 = vmatprep.subr.mxu0 0.0
  %1136 = vmatpush1.msra.mxu0 0.0
  %1137 = vmatprep.subr.mxu0 0.0
  %1138 = vmatpush1.msra.mxu0 0.0
  %1139 = vmatprep.subr.mxu0 0.0
  %1140 = vmatpush1.msra.mxu0 0.0
  %1141 = vmatprep.subr.mxu0 0.0
  %1142 = vmatpush1.msra.mxu0 0.0
  %1143 = vmatprep.subr.mxu0 0.0
  %1144 = vmatpush1.msra.mxu0 0.0
  %1145 = vmatprep.subr.mxu0 0.0
  %1146 = vmatpush1.msra.mxu0 0.0
  %1147 = vmatprep.subr.mxu0 0.0
  %1148 = vmatpush1.msra.mxu0 0.0
  %1149 = vmatprep.subr.mxu0 0.0
  %1150 = vmatpush1.msra.mxu0 0.0
  %1151 = vmatprep.subr.mxu0 0.0
  %1152 = vmatpush1.msra.mxu0 0.0
  %1153 = vmatprep.subr.mxu0 0.0
  %1154 = vmatpush1.msra.mxu0 0.0
  %1155 = vmatprep.subr.mxu0 0.0
  %1156 = vmatpush1.msra.mxu0 0.0
  %1157 = vmatprep.subr.mxu0 0.0
  %1158 = vmatpush1.msra.mxu0 0.0
  %1159 = vmatprep.subr.mxu0 0.0
  %1160 = vmatpush1.msra.mxu0 0.0
  %1161 = vmatprep.subr.mxu0 0.0
  %1162 = vmatpush1.msra.mxu0 0.0
  %1163 = vmatprep.subr.mxu0 0.0
  %1164 = vmatpush1.msra.mxu0 0.0
  %1165 = vmatprep.subr.mxu0 0.0
  %1166 = vmatpush1.msra.mxu0 0.0
  %1167 = vmatprep.subr.mxu0 0.0
  %1168 = vmatpush1.msra.mxu0 0.0
  %1169 = vmatprep.subr.mxu0 0.0
  %1170 = vmatpush1.msra.mxu0 0.0
  %1171 = vmatprep.subr.mxu0 0.0
  %1172 = vmatpush1.msra.mxu0 0.0
  %1173 = vmatprep.mubr.f32.mxu0 0.0
  %1174 = vmatmul.mubr.f32.gmra.mrb[0].mxu0 %v1036
  %v1175 = vpop.f32.mrb[0].mxu0
  %v1176 = vadd.f32 %v1033, %v1175
  %v1177 = vpop.f32.mrb[0].mxu0
  %v1178 = vadd.f32 %v1033, %v1177
  %1179 = vdwg.mxu0
  %v1180 = vmax.f32 %v1105, 0.0
  %v1181 = vmax.f32 %v1107, 0.0
  %v1182 = vmax.f32 %v1176, 0.0
  %v1183 = vmax.f32 %v1178, 0.0
  %v1184 = vld [vmem:[%s7] sm:$0xff]
  %v1185 = vld [vmem:[%s7 + $0x8] sm:$0xff]
  %v1186 = vld [vmem:[%s7 + $0x10] sm:$0xff]
  %v1187 = vld [vmem:[%s7 + $0x18] sm:$0xff]
  %v1188 = vld [vmem:[%s7 + $0x20] sm:$0xff]
  %v1189 = vld [vmem:[%s7 + $0x28] sm:$0xff]
  %v1190 = vld [vmem:[%s7 + $0x30] sm:$0xff]
  %v1191 = vld [vmem:[%s7 + $0x38] sm:$0xff]
  %v1192 = vld [vmem:[%s7 + $0x40] sm:$0xff]
  %v1193 = vld [vmem:[%s7 + $0x48] sm:$0xff]
  %v1194 = vld [vmem:[%s7 + $0x50] sm:$0xff]
  %v1195 = vld [vmem:[%s7 + $0x58] sm:$0xff]
  %v1196 = vld [vmem:[%s7 + $0x60] sm:$0xff]
  %v1197 = vld [vmem:[%s7 + $0x68] sm:$0xff]
  %v1198 = vld [vmem:[%s7 + $0x70] sm:$0xff]
  %v1199 = vld [vmem:[%s7 + $0x78] sm:$0xff]
  %v1200 = vld [vmem:[%s7 + $0x80] sm:$0xff]
  %v1201 = vld [vmem:[%s7 + $0x88] sm:$0xff]
  %v1202 = vld [vmem:[%s7 + $0x90] sm:$0xff]
  %v1203 = vld [vmem:[%s7 + $0x98] sm:$0xff]
  %v1204 = vld [vmem:[%s7 + $0xa0] sm:$0xff]
  %v1205 = vld [vmem:[%s7 + $0xa8] sm:$0xff]
  %v1206 = vld [vmem:[%s7 + $0xb0] sm:$0xff]
  %v1207 = vld [vmem:[%s7 + $0xb8] sm:$0xff]
  %v1208 = vld [vmem:[%s7 + $0xc0] sm:$0xff]
  %v1209 = vld [vmem:[%s7 + $0xc8] sm:$0xff]
  %v1210 = vld [vmem:[%s7 + $0xd0] sm:$0xff]
  %v1211 = vld [vmem:[%s7 + $0xd8] sm:$0xff]
  %v1212 = vld [vmem:[%s7 + $0xe0] sm:$0xff]
  %v1213 = vld [vmem:[%s7 + $0xe8] sm:$0xff]
  %v1214 = vld [vmem:[%s7 + $0xf0] sm:$0xff]
  %v1215 = vld [vmem:[%s7 + $0xf8] sm:$0xff]
  %v1216 = vld [vmem:[%s7 + $0x100] sm:$0xff]
  %v1217 = vld [vmem:[%s7 + $0x108] sm:$0xff]
  %v1218 = vld [vmem:[%s7 + $0x110] sm:$0xff]
  %v1219 = vld [vmem:[%s7 + $0x118] sm:$0xff]
  %v1220 = vld [vmem:[%s7 + $0x120] sm:$0xff]
  %v1221 = vld [vmem:[%s7 + $0x128] sm:$0xff]
  %v1222 = vld [vmem:[%s7 + $0x130] sm:$0xff]
  %v1223 = vld [vmem:[%s7 + $0x138] sm:$0xff]
  %v1224 = vld [vmem:[%s7 + $0x140] sm:$0xff]
  %v1225 = vld [vmem:[%s7 + $0x148] sm:$0xff]
  %v1226 = vld [vmem:[%s7 + $0x150] sm:$0xff]
  %v1227 = vld [vmem:[%s7 + $0x158] sm:$0xff]
  %v1228 = vld [vmem:[%s7 + $0x160] sm:$0xff]
  %v1229 = vld [vmem:[%s7 + $0x168] sm:$0xff]
  %v1230 = vld [vmem:[%s7 + $0x170] sm:$0xff]
  %v1231 = vld [vmem:[%s7 + $0x178] sm:$0xff]
  %v1232 = vld [vmem:[%s7 + $0x180] sm:$0xff]
  %v1233 = vld [vmem:[%s7 + $0x188] sm:$0xff]
  %v1234 = vld [vmem:[%s7 + $0x190] sm:$0xff]
  %v1235 = vld [vmem:[%s7 + $0x198] sm:$0xff]
  %v1236 = vld [vmem:[%s7 + $0x1a0] sm:$0xff]
  %v1237 = vld [vmem:[%s7 + $0x1a8] sm:$0xff]
  %v1238 = vld [vmem:[%s7 + $0x1b0] sm:$0xff]
  %v1239 = vld [vmem:[%s7 + $0x1b8] sm:$0xff]
  %v1240 = vld [vmem:[%s7 + $0x1c0] sm:$0xff]
  %v1241 = vld [vmem:[%s7 + $0x1c8] sm:$0xff]
  %v1242 = vld [vmem:[%s7 + $0x1d0] sm:$0xff]
  %v1243 = vld [vmem:[%s7 + $0x1d8] sm:$0xff]
  %v1244 = vld [vmem:[%s7 + $0x1e0] sm:$0xff]
  %v1245 = vld [vmem:[%s7 + $0x1e8] sm:$0xff]
  %v1246 = vld [vmem:[%s7 + $0x1f0] sm:$0xff]
  %v1247 = vld [vmem:[%s7 + $0x1f8] sm:$0xff]
  %1248 = vmatprep.subr.mxu0 0.0
  %1249 = vmatpush1.msra.mxu0 %v1184
  %1250 = vmatprep.subr.mxu0 0.0
  %1251 = vmatpush1.msra.mxu0 %v1185
  %1252 = vmatprep.subr.mxu0 0.0
  %1253 = vmatpush1.msra.mxu0 %v1186
  %1254 = vmatprep.subr.mxu0 0.0
  %1255 = vmatpush1.msra.mxu0 %v1187
  %1256 = vmatprep.subr.mxu0 0.0
  %1257 = vmatpush1.msra.mxu0 %v1188
  %1258 = vmatprep.subr.mxu0 0.0
  %1259 = vmatpush1.msra.mxu0 %v1189
  %1260 = vmatprep.subr.mxu0 0.0
  %1261 = vmatpush1.msra.mxu0 %v1190
  %1262 = vmatprep.subr.mxu0 0.0
  %1263 = vmatpush1.msra.mxu0 %v1191
  %1264 = vmatprep.subr.mxu0 0.0
  %1265 = vmatpush1.msra.mxu0 %v1192
  %1266 = vmatprep.subr.mxu0 0.0
  %1267 = vmatpush1.msra.mxu0 %v1193
  %1268 = vmatprep.subr.mxu0 0.0
  %1269 = vmatpush1.msra.mxu0 %v1194
  %1270 = vmatprep.subr.mxu0 0.0
  %1271 = vmatpush1.msra.mxu0 %v1195
  %1272 = vmatprep.subr.mxu0 0.0
  %1273 = vmatpush1.msra.mxu0 %v1196
  %1274 = vmatprep.subr.mxu0 0.0
  %1275 = vmatpush1.msra.mxu0 %v1197
  %1276 = vmatprep.subr.mxu0 0.0
  %1277 = vmatpush1.msra.mxu0 %v1198
  %1278 = vmatprep.subr.mxu0 0.0
  %1279 = vmatpush1.msra.mxu0 %v1199
  %1280 = vmatprep.subr.mxu0 0.0
  %1281 = vmatpush1.msra.mxu0 %v1200
  %1282 = vmatprep.subr.mxu0 0.0
  %1283 = vmatpush1.msra.mxu0 %v1201
  %1284 = vmatprep.subr.mxu0 0.0
  %1285 = vmatpush1.msra.mxu0 %v1202
  %1286 = vmatprep.subr.mxu0 0.0
  %1287 = vmatpush1.msra.mxu0 %v1203
  %1288 = vmatprep.subr.mxu0 0.0
  %1289 = vmatpush1.msra.mxu0 %v1204
  %1290 = vmatprep.subr.mxu0 0.0
  %1291 = vmatpush1.msra.mxu0 %v1205
  %1292 = vmatprep.subr.mxu0 0.0
  %1293 = vmatpush1.msra.mxu0 %v1206
  %1294 = vmatprep.subr.mxu0 0.0
  %1295 = vmatpush1.msra.mxu0 %v1207
  %1296 = vmatprep.subr.mxu0 0.0
  %1297 = vmatpush1.msra.mxu0 %v1208
  %1298 = vmatprep.subr.mxu0 0.0
  %1299 = vmatpush1.msra.mxu0 %v1209
  %1300 = vmatprep.subr.mxu0 0.0
  %1301 = vmatpush1.msra.mxu0 %v1210
  %1302 = vmatprep.subr.mxu0 0.0
  %1303 = vmatpush1.msra.mxu0 %v1211
  %1304 = vmatprep.subr.mxu0 0.0
  %1305 = vmatpush1.msra.mxu0 %v1212
  %1306 = vmatprep.subr.mxu0 0.0
  %1307 = vmatpush1.msra.mxu0 %v1213
  %1308 = vmatprep.subr.mxu0 0.0
  %1309 = vmatpush1.msra.mxu0 %v1214
  %1310 = vmatprep.subr.mxu0 0.0
  %1311 = vmatpush1.msra.mxu0 %v1215
  %1312 = vmatprep.mubr.f32.mxu0 %v1181
  %1313 = vmatmul.mubr.f32.gmra.mrb[0].mxu0 %v1180
  %v1314 = vpop.f32.mrb[0].mxu0
  %v1315 = vadd.f32 0.0, %v1314
  %v1316 = vpop.f32.mrb[0].mxu0
  %1317 = vdwg.mxu0
  %1318 = vmatprep.subr.mxu0 0.0
  %1319 = vmatpush1.msra.mxu0 %v1216
  %1320 = vmatprep.subr.mxu0 0.0
  %1321 = vmatpush1.msra.mxu0 %v1217
  %1322 = vmatprep.subr.mxu0 0.0
  %1323 = vmatpush1.msra.mxu0 %v1218
  %1324 = vmatprep.subr.mxu0 0.0
  %1325 = vmatpush1.msra.mxu0 %v1219
  %1326 = vmatprep.subr.mxu0 0.0
  %1327 = vmatpush1.msra.mxu0 %v1220
  %1328 = vmatprep.subr.mxu0 0.0
  %1329 = vmatpush1.msra.mxu0 %v1221
  %1330 = vmatprep.subr.mxu0 0.0
  %1331 = vmatpush1.msra.mxu0 %v1222
  %1332 = vmatprep.subr.mxu0 0.0
  %1333 = vmatpush1.msra.mxu0 %v1223
  %1334 = vmatprep.subr.mxu0 0.0
  %1335 = vmatpush1.msra.mxu0 %v1224
  %1336 = vmatprep.subr.mxu0 0.0
  %1337 = vmatpush1.msra.mxu0 %v1225
  %1338 = vmatprep.subr.mxu0 0.0
  %1339 = vmatpush1.msra.mxu0 %v1226
  %1340 = vmatprep.subr.mxu0 0.0
  %1341 = vmatpush1.msra.mxu0 %v1227
  %1342 = vmatprep.subr.mxu0 0.0
  %1343 = vmatpush1.msra.mxu0 %v1228
  %1344 = vmatprep.subr.mxu0 0.0
  %1345 = vmatpush1.msra.mxu0 %v1229
  %1346 = vmatprep.subr.mxu0 0.0
  %1347 = vmatpush1.msra.mxu0 %v1230
  %1348 = vmatprep.subr.mxu0 0.0
  %1349 = vmatpush1.msra.mxu0 %v1231
  %1350 = vmatprep.subr.mxu0 0.0
  %1351 = vmatpush1.msra.mxu0 %v1232
  %1352 = vmatprep.subr.mxu0 0.0
  %1353 = vmatpush1.msra.mxu0 %v1233
  %1354 = vmatprep.subr.mxu0 0.0
  %1355 = vmatpush1.msra.mxu0 %v1234
  %1356 = vmatprep.subr.mxu0 0.0
  %1357 = vmatpush1.msra.mxu0 %v1235
  %1358 = vmatprep.subr.mxu0 0.0
  %1359 = vmatpush1.msra.mxu0 %v1236
  %1360 = vmatprep.subr.mxu0 0.0
  %1361 = vmatpush1.msra.mxu0 %v1237
  %1362 = vmatprep.subr.mxu0 0.0
  %1363 = vmatpush1.msra.mxu0 %v1238
  %1364 = vmatprep.subr.mxu0 0.0
  %1365 = vmatpush1.msra.mxu0 %v1239
  %1366 = vmatprep.subr.mxu0 0.0
  %1367 = vmatpush1.msra.mxu0 %v1240
  %1368 = vmatprep.subr.mxu0 0.0
  %1369 = vmatpush1.msra.mxu0 %v1241
  %1370 = vmatprep.subr.mxu0 0.0
  %1371 = vmatpush1.msra.mxu0 %v1242
  %1372 = vmatprep.subr.mxu0 0.0
  %1373 = vmatpush1.msra.mxu0 %v1243
  %1374 = vmatprep.subr.mxu0 0.0
  %1375 = vmatpush1.msra.mxu0 %v1244
  %1376 = vmatprep.subr.mxu0 0.0
  %1377 = vmatpush1.msra.mxu0 %v1245
  %1378 = vmatprep.subr.mxu0 0.0
  %1379 = vmatpush1.msra.mxu0 %v1246
  %1380 = vmatprep.subr.mxu0 0.0
  %1381 = vmatpush1.msra.mxu0 %v1247
  %1382 = vmatprep.mubr.f32.mxu0 %v1183
  %1383 = vmatmul.mubr.f32.gmra.mrb[0].mxu0 %v1182
  %v1384 = vpop.f32.mrb[0].mxu0
  %v1385 = vadd.f32 %v1315, %v1384
  %v1386 = vpop.f32.mrb[0].mxu0
  %1387 = vdwg.mxu0
  %v1388 = vld [vmem:[%s8] sm:$0xff]
  %v1389 = vld [vmem:[%s8 + $0x8] sm:$0x3]
  %v1390 = vld [vmem:[%s9] sm:$0xff]
  %v1391 = vld [vmem:[%s9 + $0x8] sm:$0x3]
  %1393 = vset.pattern.permute.xlu0 0
  %1394 = vperm.xlu0 %1393, %v1390
  %v1395 = vpop.permute.xlu0 %1394
  %1398 = vset.pattern.permute.xlu0 0
  %1399 = vperm.xlu0 %1398, %v1391
  %v1400 = vpop.permute.xlu0 %1399
  %vm1402 = vcmask 64512
  %v1404 = vsel %vm1402, %v1388, 0
  %v1407 = vsel %vm1402, %v1389, 0
  %1409 = vmatprep.subr.mxu0 0.0
  %1410 = vmatpush1.msra.mxu0 %v1385
  %1411 = vmatprep.subr.mxu0 0.0
  %1412 = vmatpush1.msra.mxu0 0.0
  %1413 = vmatprep.subr.mxu0 0.0
  %1414 = vmatpush1.msra.mxu0 0.0
  %1415 = vmatprep.subr.mxu0 0.0
  %1416 = vmatpush1.msra.mxu0 0.0
  %1417 = vmatprep.subr.mxu0 0.0
  %1418 = vmatpush1.msra.mxu0 0.0
  %1419 = vmatprep.subr.mxu0 0.0
  %1420 = vmatpush1.msra.mxu0 0.0
  %1421 = vmatprep.subr.mxu0 0.0
  %1422 = vmatpush1.msra.mxu0 0.0
  %1423 = vmatprep.subr.mxu0 0.0
  %1424 = vmatpush1.msra.mxu0 0.0
  %1425 = vmatprep.subr.mxu0 0.0
  %1426 = vmatpush1.msra.mxu0 0.0
  %1427 = vmatprep.subr.mxu0 0.0
  %1428 = vmatpush1.msra.mxu0 0.0
  %1429 = vmatprep.subr.mxu0 0.0
  %1430 = vmatpush1.msra.mxu0 0.0
  %1431 = vmatprep.subr.mxu0 0.0
  %1432 = vmatpush1.msra.mxu0 0.0
  %1433 = vmatprep.subr.mxu0 0.0
  %1434 = vmatpush1.msra.mxu0 0.0
  %1435 = vmatprep.subr.mxu0 0.0
  %1436 = vmatpush1.msra.mxu0 0.0
  %1437 = vmatprep.subr.mxu0 0.0
  %1438 = vmatpush1.msra.mxu0 0.0
  %1439 = vmatprep.subr.mxu0 0.0
  %1440 = vmatpush1.msra.mxu0 0.0
  %1441 = vmatprep.subr.mxu0 0.0
  %1442 = vmatpush1.msra.mxu0 0.0
  %1443 = vmatprep.subr.mxu0 0.0
  %1444 = vmatpush1.msra.mxu0 0.0
  %1445 = vmatprep.subr.mxu0 0.0
  %1446 = vmatpush1.msra.mxu0 0.0
  %1447 = vmatprep.subr.mxu0 0.0
  %1448 = vmatpush1.msra.mxu0 0.0
  %1449 = vmatprep.subr.mxu0 0.0
  %1450 = vmatpush1.msra.mxu0 0.0
  %1451 = vmatprep.subr.mxu0 0.0
  %1452 = vmatpush1.msra.mxu0 0.0
  %1453 = vmatprep.subr.mxu0 0.0
  %1454 = vmatpush1.msra.mxu0 0.0
  %1455 = vmatprep.subr.mxu0 0.0
  %1456 = vmatpush1.msra.mxu0 0.0
  %1457 = vmatprep.subr.mxu0 0.0
  %1458 = vmatpush1.msra.mxu0 0.0
  %1459 = vmatprep.subr.mxu0 0.0
  %1460 = vmatpush1.msra.mxu0 0.0
  %1461 = vmatprep.subr.mxu0 0.0
  %1462 = vmatpush1.msra.mxu0 0.0
  %1463 = vmatprep.subr.mxu0 0.0
  %1464 = vmatpush1.msra.mxu0 0.0
  %1465 = vmatprep.subr.mxu0 0.0
  %1466 = vmatpush1.msra.mxu0 0.0
  %1467 = vmatprep.subr.mxu0 0.0
  %1468 = vmatpush1.msra.mxu0 0.0
  %1469 = vmatprep.subr.mxu0 0.0
  %1470 = vmatpush1.msra.mxu0 0.0
  %1471 = vmatprep.subr.mxu0 0.0
  %1472 = vmatpush1.msra.mxu0 0.0
  %1473 = vmatprep.mubr.f32.mxu0 0.0
  %1474 = vmatmul.mubr.f32.gmra.mrb[0].mxu0 %v1404
  %v1475 = vpop.f32.mrb[0].mxu0
  %v1476 = vadd.f32 %v1395, %v1475
  %v1477 = vpop.f32.mrb[0].mxu0
  %1478 = vmatprep.mubr.f32.mxu0 0.0
  %1479 = vmatmul.mubr.f32.gmra.mrb[0].mxu0 %v1407
  %v1480 = vpop.f32.mrb[0].mxu0
  %v1481 = vadd.f32 %v1400, %v1480
  %v1482 = vpop.f32.mrb[0].mxu0
  %1483 = vdwg.mxu0
  %vm1484 = vcmask 15360
  %1485 = vst.msk [vmem:[%s10] sm:$0xff] %vm1484, %v1476
  %vm1486 = vcmask 9216
  %1487 = vst.msk [vmem:[%s10 + $0x8] sm:$0x3] %vm1486, %v1481
  // Predicated region
  $region42: #{checkpointable_forward.1} parent=0 // pred_check
    _
  $region43: #{checkpointable_forward.1} parent=0 // pred_check_branch
    %1489 = sbr.rel (0) target = $region45
  $region44: #{checkpointable_forward.1} parent=0 // pred_region
    _
  $region45: #{checkpointable_forward.1} parent=0 // pred_fallthru
    _
  // Predicated region
  $region46: #{checkpointable_forward.1} parent=0 // pred_check
    _
  $region47: #{checkpointable_forward.1} parent=0 // pred_check_branch
    %1491 = sbr.rel (0) target = $region49
  $region48: #{checkpointable_forward.1} parent=0 // pred_region
    _
  $region49: #{checkpointable_forward.1} parent=0 // pred_fallthru
    _

</llo_original>
